<compile_context>
chip_gen: v7x
topology: tpu7x:2x2x1
jax: 0.10.0
libtpu: 0.0.40
codegen_flags: <defaults>
</compile_context>

<pallas_src>
import jax
import jax.numpy as jnp
from jax.experimental import pallas as pl
from jax.experimental.pallas import tpu as pltpu

INF = 1.0e6
FOCAL_GAMMA = 2.0      # gamma=2 is hard-coded below as squaring
FOCAL_ALPHA = 0.25


def _ceil_to(x, m):
    return -(-x // m) * m


# --------------------------------------------------------------------------- #
# Kernel 1: batched FCOS target assignment (center sampling + size binning).   #
#   grid = (N, R // TS); (TS, 128) sublane-dense tiles; running-min over       #
#   boxes (unrolled); boxes live in SMEM.                                      #
# --------------------------------------------------------------------------- #
def _make_assign_kernel(bmax, ts):
    unroll = True if bmax <= 32 else 8

    def _assign_kernel(boxinfo_ref, locs_x_ref, locs_y_ref, stride_ref,
                       lower_ref, upper_ref, label_out_ref, bbox_out_ref):
        n = pl.program_id(0)
        lx = locs_x_ref[...]                      # (TS, 128) dense tiles
        ly = locs_y_ref[...]
        # TODO(synk): reference computes `stride = self.fpn_strides * self.radius`
        # (list * float -> TypeError); intended per-level stride*radius is used.
        sr = stride_ref[...]                      # per-location stride*radius
        lo = lower_ref[...]
        up = upper_ref[...]
        base = n * bmax

        def body(b, carry):
            min_area, sel_l, sel_t, sel_r, sel_b, sel_lab = carry
            col = base + b
            x1 = boxinfo_ref[0, col]
            y1 = boxinfo_ref[1, col]
            x2 = boxinfo_ref[2, col]
            y2 = boxinfo_ref[3, col]
            area = boxinfo_ref[4, col]            # padded boxes carry area=INF
            lab = boxinfo_ref[5, col]

            # ltrb regression targets for this box at every location -> (TS, 128)
            l = lx - x1
            t = ly - y1
            r = x2 - lx
            bb = y2 - ly

            # center sampling region.
            cx = (x1 + x2) * 0.5
            cy = (y1 + y2) * 0.5
            xmin = jnp.maximum(cx - sr, x1)
            ymin = jnp.maximum(cy - sr, y1)
            xmax = jnp.minimum(cx + sr, x2)
            ymax = jnp.minimum(cy + sr, y2)
            within = (jnp.minimum(jnp.minimum(lx - xmin, ly - ymin),
                                  jnp.minimum(xmax - lx, ymax - ly)) > 0.0)

            # TODO(synk): reference uses python `and` on tensors (error); elementwise &.
            max_ltrb = jnp.maximum(jnp.maximum(l, t), jnp.maximum(r, bb))
            in_level = (max_ltrb >= lo) & (max_ltrb <= up)

            cand = jnp.where(within & in_level, area, INF)
            # strict '<' => first box (input order) wins ties; the reference's
            # descending-area sort + first-argmin is order-ambiguous for ties.
            win = cand < min_area
            return (jnp.where(win, cand, min_area),
                    jnp.where(win, l, sel_l),
                    jnp.where(win, t, sel_t),
                    jnp.where(win, r, sel_r),
                    jnp.where(win, bb, sel_b),
                    jnp.where(win, lab, sel_lab))

        zero = jnp.zeros((ts, 128), jnp.float32)
        init = (jnp.full((ts, 128), INF, jnp.float32),
                zero, zero, zero, zero, zero)
        min_area, sel_l, sel_t, sel_r, sel_b, sel_lab = jax.lax.fori_loop(
            0, bmax, body, init, unroll=unroll)

        # background (no box selected) -> label 0.  Label carried as f32 via the
        # running min; exact for class ids < 2^24.
        lab = jnp.where(min_area >= INF, 0.0, sel_lab)
        label_out_ref[0] = lab.astype(jnp.int32)          # (TS, 128)
        # channel-major bbox targets; each store is a dense (TS, 128) slab.
        bbox_out_ref[0, 0] = sel_l
        bbox_out_ref[1, 0] = sel_t
        bbox_out_ref[2, 0] = sel_r
        bbox_out_ref[3, 0] = sel_b
    return _assign_kernel


def assign_targets_batched(boxinfo, locs_x, locs_y, stride_r, lower, upper,
                           n_images, bmax, *, ts=8):
    R = locs_x.shape[0]                    # rows of 128 lanes (multiple of ts)
    n_ptiles = R // ts
    loc_spec = pl.BlockSpec((ts, 128), lambda n, p: (p, 0))
    lab, box = pl.pallas_call(
        _make_assign_kernel(bmax, ts),
        out_shape=(jax.ShapeDtypeStruct((n_images, R, 128), jnp.int32),
                   jax.ShapeDtypeStruct((4, n_images, R, 128), jnp.float32)),
        grid=(n_images, n_ptiles),
        in_specs=[
            pl.BlockSpec(memory_space=pltpu.MemorySpace.SMEM),   # (6, N*Bmax) box table
            loc_spec, loc_spec, loc_spec, loc_spec, loc_spec,
        ],
        out_specs=(pl.BlockSpec((1, ts, 128), lambda n, p: (n, p, 0)),
                   pl.BlockSpec((4, 1, ts, 128), lambda n, p: (0, n, p, 0))),
        compiler_params=pltpu.CompilerParams(
            dimension_semantics=("parallel", "parallel")),
    )(boxinfo, locs_x, locs_y, stride_r, lower, upper)
    return lab, box


# --------------------------------------------------------------------------- #
# Kernel 2: fused loss hot path (focal + DIoU + centerness BCE partial sums).  #
#   grid = (2, n_half): axis 0 "parallel" (2 TCs on v7x), axis 1 accumulates.  #
# --------------------------------------------------------------------------- #
def _make_loss_kernel(m_total, tm, n_half, n_classes):
    def _loss_kernel(logits_ref, labels_ref, pbox_ref, tbox_ref, pcen_ref,
                     out_ref, acc_ref):
        c = pl.program_id(0)
        i = pl.program_id(1)
        step = c * n_half + i

        @pl.when(i == 0)
        def _():
            acc_ref[...] = jnp.zeros_like(acc_ref)

        # in-kernel tail mask replaces any host-side padding of the big arrays.
        lane = jax.lax.broadcasted_iota(jnp.int32, (1, tm), 1)
        loc_valid = (step * tm + lane) < m_total                    # (1, TM)
        labels = jnp.where(loc_valid, labels_ref[...], -1)          # (1, TM)

        # ---- sigmoid focal loss (maskrcnn-benchmark style, classes 1..C) ----
        x = logits_ref[...].astype(jnp.float32)                     # (C, TM)
        class_range = jax.lax.broadcasted_iota(jnp.int32, (n_classes, 1), 0) + 1
        t_eq = labels == class_range                                # (C, TM)
        t_valid = labels >= 0                                       # (1, TM)
        e = jnp.exp(-jnp.abs(x))                                    # single EUP exp
        softplus_x = jnp.maximum(x, 0.0) + jnp.log(1.0 + e)
        log_p = x - softplus_x                                      # log(sigmoid(x))
        log_1mp = -softplus_x                                       # log(1-sigmoid(x))
        # p / (1-p) rebuilt from e (no extra sigmoid EUP pass).
        inv_1pe = pl.reciprocal(1.0 + e, approx=True)
        p = jnp.where(x >= 0.0, 1.0, e) * inv_1pe
        one_m_p = jnp.where(x >= 0.0, e, 1.0) * inv_1pe
        term1 = one_m_p * one_m_p * log_p                           # gamma = 2
        term2 = p * p * log_1mp
        focal = (-jnp.where(t_eq, FOCAL_ALPHA * term1, 0.0)
                 - jnp.where((~t_eq) & t_valid, (1.0 - FOCAL_ALPHA) * term2, 0.0))
        focal_lane = jnp.sum(focal, axis=0, keepdims=True)          # (1, TM)

        pos = labels > 0
        posf = pos.astype(jnp.float32)

        # ---- centerness targets from ltrb regression targets ----
        tb = tbox_ref[...]                                          # (4, TM) f32
        tl, tt, tr, tbt = tb[0:1], tb[1:2], tb[2:3], tb[3:4]
        lr_min = jnp.minimum(tl, tr)
        lr_max = jnp.maximum(tl, tr)
        ud_min = jnp.minimum(tt, tbt)
        ud_max = jnp.maximum(tt, tbt)
        lr_max_s = jnp.where(pos, lr_max, 1.0)
        ud_max_s = jnp.where(pos, ud_max, 1.0)
        cen_raw = (lr_min * pl.reciprocal(lr_max_s, approx=True)
                   * ud_min * pl.reciprocal(ud_max_s, approx=True))
        cen_t = jnp.where(pos, jnp.sqrt(jnp.maximum(cen_raw, 0.0)), 0.0)

        # ---- DIoU loss ('Corner' mode: pred and target are x1,y1,x2,y2) ----
        pb = pbox_ref[...].astype(jnp.float32)                      # (4, TM)
        px1, py1, px2, py2 = pb[0:1], pb[1:2], pb[2:3], pb[3:4]
        gx1, gy1, gx2, gy2 = tl, tt, tr, tbt
        area_p = (px2 - px1) * (py2 - py1)
        area_g = (gx2 - gx1) * (gy2 - gy1)
        iw = jnp.maximum(jnp.minimum(px2, gx2) - jnp.maximum(px1, gx1), 0.0)
        ih = jnp.maximum(jnp.minimum(py2, gy2) - jnp.maximum(py1, gy1), 0.0)
        inter = iw * ih
        union = area_p + area_g - inter
        pcx = (px1 + px2) * 0.5
        pcy = (py1 + py2) * 0.5
        gcx = (gx1 + gx2) * 0.5
        gcy = (gy1 + gy2) * 0.5
        inter_diag = (gcx - pcx) ** 2 + (gcy - pcy) ** 2
        ow = jnp.maximum(jnp.maximum(px2, gx2) - jnp.minimum(px1, gx1), 0.0)
        oh = jnp.maximum(jnp.maximum(py2, gy2) - jnp.minimum(py1, gy1), 0.0)
        outer_diag = ow * ow + oh * oh
        union_s = jnp.where(pos & (union != 0.0), union, 1.0)
        outer_s = jnp.where(pos & (outer_diag > 0.0), outer_diag, 1.0)
        diou = jnp.clip(inter * pl.reciprocal(union_s, approx=True)
                        - inter_diag * pl.reciprocal(outer_s, approx=True),
                        -1.0, 1.0)
        diou_lane = jnp.where(pos, (1.0 - diou) * cen_t, 0.0)
        w_lane = cen_t                                              # already 0 off-pos

        # ---- centerness BCE-with-logits (over positives) ----
        xc = pcen_ref[...].astype(jnp.float32)
        bce = (jnp.maximum(xc, 0.0) - xc * cen_t
               + jnp.log(1.0 + jnp.exp(-jnp.abs(xc))))
        bce_lane = jnp.where(pos, bce, 0.0)

        # per-lane partial accumulation; single (8, TM) RMW per step.
        upd = jnp.concatenate(
            [focal_lane, posf, diou_lane, w_lane, bce_lane,
             jnp.zeros((3, tm), jnp.float32)], axis=0)              # (8, TM)
        acc_ref[...] += upd

        # single cross-lane reduction in the epilogue.
        @pl.when(i == n_half - 1)
        def _():
            sums = jnp.sum(acc_ref[...], axis=1, keepdims=True)     # (8, 1)
            lane128 = jax.lax.broadcasted_iota(jnp.int32, (8, 128), 1)
            out_ref[0] = jnp.where(lane128 == 0, sums, 0.0)
    return _loss_kernel


def _loss_sums(logits_cm, labels_1m, pbox_4m, tbox_4m, pcen_1m, *, tm=2048):
    """Returns (focal_sum, num_pos, diou_sum, w_sum, bce_sum).

    Preds may be bf16 (cast to f32 in-kernel) to halve HBM traffic.
    """
    C, M = logits_cm.shape
    # keep the block no larger than M (multiple of 128) so only the tail block
    # is partial; sweep tm=2048..8192 for production M.
    tm_eff = min(tm, max(128, (M // 128) * 128))
    n_steps = -(-M // tm_eff)
    n_half = -(-n_steps // 2)          # per-core step count (2-way split for v7x)

    def in_map(c, i):
        # clamp the (possibly duplicated) final block into range; its
        # contribution is zeroed by the in-kernel static-M lane mask.
        return (0, jnp.minimum(c * n_half + i, n_steps - 1))

    out = pl.pallas_call(
        _make_loss_kernel(M, tm_eff, n_half, C),
        out_shape=jax.ShapeDtypeStruct((2, 8, 128), jnp.float32),
        grid=(2, n_half),
        in_specs=[
            pl.BlockSpec((C, tm_eff), in_map),
            pl.BlockSpec((1, tm_eff), in_map),
            pl.BlockSpec((4, tm_eff), in_map),
            pl.BlockSpec((4, tm_eff), in_map),
            pl.BlockSpec((1, tm_eff), in_map),
        ],
        out_specs=pl.BlockSpec((1, 8, 128), lambda c, i: (c, 0, 0)),
        scratch_shapes=[pltpu.VMEM((8, tm_eff), jnp.float32)],
        compiler_params=pltpu.CompilerParams(
            dimension_semantics=("parallel", "arbitrary")),
    )(logits_cm, labels_1m, pbox_4m, tbox_4m, pcen_1m)
    sums = out.sum(axis=0)             # merge the two per-core rows
    return sums[0, 0], sums[1, 0], sums[2, 0], sums[3, 0], sums[4, 0]


# --------------------------------------------------------------------------- #
# FCOSLoss.forward glue                                                        #
# --------------------------------------------------------------------------- #
def fcos_loss_forward(pred_locs, pred_scores, pred_center, boxes, labels,
                      locations, stride_r, lower, upper, reg_alpha=1.0,
                      bmax=None):
    N, P, C = pred_scores.shape

    # ---- sublane-dense location layout for the assignment kernel ----
    ts = min(32, _ceil_to(-(-P // 128), 8))       # sublane tile rows (mult of 8)
    R = _ceil_to(-(-P // 128), ts)
    Ppad = R * 128

    def _dense(v_flat, fill):
        v = jnp.asarray(v_flat, jnp.float32).reshape(-1)
        if Ppad > P:
            v = jnp.concatenate([v, jnp.full((Ppad - P,), fill, jnp.float32)])
        return v.reshape(R, 128)

    locs_x = _dense(locations[:, 0], -1.0e4)      # padded locs never fall in a box
    locs_y = _dense(locations[:, 1], -1.0e4)
    sr = _dense(stride_r, 0.0)
    lo = _dense(lower, 0.0)
    up = _dense(upper, 0.0)

    # Pack GT boxes into a fixed-size (6, N*Bmax) SMEM table: rows are
    # x1, y1, x2, y2, area, label.  Padded slots get area = INF so they are
    # never selected; this also handles images with zero GT boxes and avoids
    # per-box-count recompiles.  (No host-side area sort: min-area selection
    # is order independent.)
    if bmax is None:
        bmax = max(1, max(int(b.shape[0]) for b in boxes))
        bmax = _ceil_to(bmax, 8)
    cols = []
    for i in range(N):
        bxs = jnp.asarray(boxes[i], jnp.float32)
        lbs = jnp.asarray(labels[i], jnp.float32)     # labels carried as f32
        nb = bxs.shape[0]
        areas = (bxs[:, 2] - bxs[:, 0]) * (bxs[:, 3] - bxs[:, 1])
        info = jnp.concatenate([bxs.T, areas[None], lbs[None]], axis=0)   # (6, nb)
        pad = jnp.zeros((6, bmax - nb), jnp.float32).at[4, :].set(INF)
        cols.append(jnp.concatenate([info, pad], axis=1))
    boxinfo = jnp.concatenate(cols, axis=1)                               # (6, N*Bmax)

    lab_t, box_t = assign_targets_batched(boxinfo, locs_x, locs_y, sr, lo, up,
                                          N, bmax, ts=ts)

    # TODO(synk): reference mixes image-major preds with level-major targets in
    # its flattening loop (shape bug); intended image-major alignment used.
    # Targets come out channel-major already; only a cheap slice removes the
    # lane padding (no materialized transpose of the target tensor).
    labels_flat = lab_t.reshape(N, Ppad)[:, :P].reshape(1, N * P)          # int32
    tbox_flat = box_t.reshape(4, N, Ppad)[:, :, :P].reshape(4, N * P)      # f32

    # TODO(synk): if the detection head can emit channel-major (C, N*P) bf16
    # logits / (4, N*P) boxes directly, pass them through and drop these
    # transposes entirely (saves the remaining HBM round-trip of the largest
    # tensor).  Transposes are done on the bf16 copies to halve their traffic.
    logits_flat = pred_scores.astype(jnp.bfloat16).reshape(N * P, C).T     # (C, N*P)
    pbox_flat = pred_locs.astype(jnp.bfloat16).reshape(N * P, 4).T         # (4, N*P)
    pcen_flat = pred_center.astype(jnp.bfloat16).reshape(1, N * P)         # (1, N*P)

    focal_sum, num_pos, diou_sum, w_sum, bce_sum = _loss_sums(
        logits_flat, labels_flat, pbox_flat, tbox_flat, pcen_flat)

    conf_loss = focal_sum / (num_pos + float(N))
    loc_loss = jnp.where(w_sum > 0, diou_sum / jnp.maximum(w_sum, 1e-12), 0.0)
    center_loss = jnp.where(num_pos > 0,
                            bce_sum / jnp.maximum(num_pos, 1.0), 0.0)
    return conf_loss + reg_alpha * loc_loss + center_loss


def build_locations(level_shapes):
    fpn_strides = [8 / 512.0, 16 / 512.0, 32 / 512.0, 64 / 512.0, 128 / 512.0]
    sizes = [(0.0, 0.08), (0.08, 0.16), (0.16, 0.32), (0.32, 0.64), (0.64, 1.0)]
    radius = 1.5
    locs, strr, lo, up = [], [], [], []
    for lvl, (h, w) in enumerate(level_shapes):
        ys = (jnp.arange(h, dtype=jnp.float32) + 0.5) / h
        xs = (jnp.arange(w, dtype=jnp.float32) + 0.5) / w
        yy, xx = jnp.meshgrid(ys, xs, indexing="ij")
        pts = jnp.stack([xx.reshape(-1), yy.reshape(-1)], axis=1)
        n = h * w
        locs.append(pts)
        strr.append(jnp.full((n,), fpn_strides[lvl] * radius, jnp.float32))
        lo.append(jnp.full((n,), sizes[lvl][0], jnp.float32))
        up.append(jnp.full((n,), sizes[lvl][1], jnp.float32))
    return (jnp.concatenate(locs, 0), jnp.concatenate(strr, 0),
            jnp.concatenate(lo, 0), jnp.concatenate(up, 0))


if __name__ == "__main__":
    # 5 pyramid levels -> P = 400+100+25+9+1 = 535 locations; N*P = 1070, so the
    # loss kernel (tm_eff=1024) runs a full block on core 0 and a masked partial
    # tail block on core 1; the assignment kernel exercises lane padding
    # (P=535 -> Ppad=1024) and the unrolled running-min loop.
    level_shapes = [(20, 20), (10, 10), (5, 5), (3, 3), (1, 1)]
    locations, stride_r, lower, upper = build_locations(level_shapes)
    P = locations.shape[0]
    N = 2            # batch
    C = 4            # n_classes (sigmoid focal over classes 1..C, 0 = background)
    reg_alpha = 1.0  # config.reg_weights

    key = jax.random.PRNGKey(0)
    k1, k2, k3 = jax.random.split(key, 3)
    pred_locs = jax.random.uniform(k1, (N, P, 4), jnp.float32, 0.0, 0.5)
    pred_scores = jax.random.normal(k2, (N, P, C), jnp.float32)
    pred_center = jax.random.normal(k3, (N, P, 1), jnp.float32)

    # ground-truth boxes placed so several pyramid levels get real positives.
    boxes = [
        jnp.array([[0.500, 0.500, 0.625, 0.625],
                   [0.275, 0.275, 0.475, 0.475],
                   [0.100, 0.100, 0.900, 0.900]], jnp.float32),
        jnp.array([[0.000, 0.000, 0.125, 0.125],
                   [0.525, 0.525, 0.725, 0.725],
                   [0.150, 0.150, 0.850, 0.850]], jnp.float32),
    ]
    labels = [jnp.array([1, 2, 3], jnp.int32),
              jnp.array([2, 3, 4], jnp.int32)]

    loss = fcos_loss_forward(pred_locs, pred_scores, pred_center, boxes, labels,
                             locations, stride_r, lower, upper,
                             reg_alpha=reg_alpha)
    loss = jax.block_until_ready(loss)
    assert loss.shape == () and bool(jnp.isfinite(loss))
    print("KERNEL_OK")
</pallas_src>

<mosaic_0001>
module attributes {stable_mosaic.version = 11 : i64} {
  func.func @_assign_kernel(%arg0: i32, %arg1: i32, %arg2: memref<6x16xf32, #tpu.memory_space<smem>>, %arg3: memref<8x128xf32, #tpu.memory_space<vmem>>, %arg4: memref<8x128xf32, #tpu.memory_space<vmem>>, %arg5: memref<8x128xf32, #tpu.memory_space<vmem>>, %arg6: memref<8x128xf32, #tpu.memory_space<vmem>>, %arg7: memref<8x128xf32, #tpu.memory_space<vmem>>, %arg8: memref<1x8x128xi32, #tpu.memory_space<vmem>>, %arg9: memref<4x1x8x128xf32, #tpu.memory_space<vmem>>) attributes {dimension_semantics = [#tpu.dimension_semantics<parallel>, #tpu.dimension_semantics<parallel>], iteration_bounds = array<i64: 2, 1>, scalar_prefetch = 0 : i64, scratch_operands = 0 : i64, tpu.core_type = #tpu.core_type<tc>, window_params = [{transform_indices = @transform_0, window_bounds = array<i64: 6, 16>}, {transform_indices = @transform_1, window_bounds = array<i64: 8, 128>}, {transform_indices = @transform_2, window_bounds = array<i64: 8, 128>}, {transform_indices = @transform_3, window_bounds = array<i64: 8, 128>}, {transform_indices = @transform_4, window_bounds = array<i64: 8, 128>}, {transform_indices = @transform_5, window_bounds = array<i64: 8, 128>}, {transform_indices = @transform_6, window_bounds = array<i64: 1, 8, 128>}, {transform_indices = @transform_7, window_bounds = array<i64: 4, 1, 8, 128>}]} {
    %c0 = arith.constant 0 : index
    %c0_0 = arith.constant 0 : index
    %0 = vector.load %arg3[%c0, %c0_0] : memref<8x128xf32, #tpu.memory_space<vmem>>, vector<8x128xf32>
    %c0_1 = arith.constant 0 : index
    %c0_2 = arith.constant 0 : index
    %1 = vector.load %arg4[%c0_1, %c0_2] : memref<8x128xf32, #tpu.memory_space<vmem>>, vector<8x128xf32>
    %c0_3 = arith.constant 0 : index
    %c0_4 = arith.constant 0 : index
    %2 = vector.load %arg5[%c0_3, %c0_4] : memref<8x128xf32, #tpu.memory_space<vmem>>, vector<8x128xf32>
    %c0_5 = arith.constant 0 : index
    %c0_6 = arith.constant 0 : index
    %3 = vector.load %arg6[%c0_5, %c0_6] : memref<8x128xf32, #tpu.memory_space<vmem>>, vector<8x128xf32>
    %c0_7 = arith.constant 0 : index
    %c0_8 = arith.constant 0 : index
    %4 = vector.load %arg7[%c0_7, %c0_8] : memref<8x128xf32, #tpu.memory_space<vmem>>, vector<8x128xf32>
    %c8_i32 = arith.constant 8 : i32
    %5 = arith.muli %arg0, %c8_i32 : i32
    %cst = arith.constant 0.000000e+00 : f32
    %6 = vector.broadcast %cst : f32 to vector<8x128xf32>
    %cst_9 = arith.constant 1.000000e+06 : f32
    %7 = vector.broadcast %cst_9 : f32 to vector<8x128xf32>
    %c0_i32 = arith.constant 0 : i32
    %8 = arith.addi %5, %c0_i32 : i32
    %c0_10 = arith.constant 0 : index
    %9 = arith.index_cast %8 : i32 to index
    %10 = memref.load %arg2[%c0_10, %9] : memref<6x16xf32, #tpu.memory_space<smem>>
    %c1 = arith.constant 1 : index
    %11 = arith.index_cast %8 : i32 to index
    %12 = memref.load %arg2[%c1, %11] : memref<6x16xf32, #tpu.memory_space<smem>>
    %c2 = arith.constant 2 : index
    %13 = arith.index_cast %8 : i32 to index
    %14 = memref.load %arg2[%c2, %13] : memref<6x16xf32, #tpu.memory_space<smem>>
    %c3 = arith.constant 3 : index
    %15 = arith.index_cast %8 : i32 to index
    %16 = memref.load %arg2[%c3, %15] : memref<6x16xf32, #tpu.memory_space<smem>>
    %c4 = arith.constant 4 : index
    %17 = arith.index_cast %8 : i32 to index
    %18 = memref.load %arg2[%c4, %17] : memref<6x16xf32, #tpu.memory_space<smem>>
    %c5 = arith.constant 5 : index
    %19 = arith.index_cast %8 : i32 to index
    %20 = memref.load %arg2[%c5, %19] : memref<6x16xf32, #tpu.memory_space<smem>>
    %21 = vector.broadcast %10 : f32 to vector<8x128xf32>
    %22 = arith.subf %0, %21 : vector<8x128xf32>
    %23 = vector.broadcast %12 : f32 to vector<8x128xf32>
    %24 = arith.subf %1, %23 : vector<8x128xf32>
    %25 = vector.broadcast %14 : f32 to vector<8x128xf32>
    %26 = arith.subf %25, %0 : vector<8x128xf32>
    %27 = vector.broadcast %16 : f32 to vector<8x128xf32>
    %28 = arith.subf %27, %1 : vector<8x128xf32>
    %29 = arith.addf %10, %14 : f32
    %cst_11 = arith.constant 5.000000e-01 : f32
    %30 = arith.mulf %29, %cst_11 : f32
    %31 = arith.addf %12, %16 : f32
    %cst_12 = arith.constant 5.000000e-01 : f32
    %32 = arith.mulf %31, %cst_12 : f32
    %33 = vector.broadcast %30 : f32 to vector<8x128xf32>
    %34 = arith.subf %33, %2 : vector<8x128xf32>
    %35 = vector.broadcast %10 : f32 to vector<8x128xf32>
    %36 = arith.maximumf %34, %35 : vector<8x128xf32>
    %37 = vector.broadcast %32 : f32 to vector<8x128xf32>
    %38 = arith.subf %37, %2 : vector<8x128xf32>
    %39 = vector.broadcast %12 : f32 to vector<8x128xf32>
    %40 = arith.maximumf %38, %39 : vector<8x128xf32>
    %41 = vector.broadcast %30 : f32 to vector<8x128xf32>
    %42 = arith.addf %41, %2 : vector<8x128xf32>
    %43 = vector.broadcast %14 : f32 to vector<8x128xf32>
    %44 = arith.minimumf %42, %43 : vector<8x128xf32>
    %45 = vector.broadcast %32 : f32 to vector<8x128xf32>
    %46 = arith.addf %45, %2 : vector<8x128xf32>
    %47 = vector.broadcast %16 : f32 to vector<8x128xf32>
    %48 = arith.minimumf %46, %47 : vector<8x128xf32>
    %49 = arith.subf %0, %36 : vector<8x128xf32>
    %50 = arith.subf %1, %40 : vector<8x128xf32>
    %51 = arith.minimumf %49, %50 : vector<8x128xf32>
    %52 = arith.subf %44, %0 : vector<8x128xf32>
    %53 = arith.subf %48, %1 : vector<8x128xf32>
    %54 = arith.minimumf %52, %53 : vector<8x128xf32>
    %55 = arith.minimumf %51, %54 : vector<8x128xf32>
    %cst_13 = arith.constant 0.000000e+00 : f32
    %56 = vector.broadcast %cst_13 : f32 to vector<8x128xf32>
    %57 = arith.cmpf ogt, %55, %56 : vector<8x128xf32>
    %58 = arith.maximumf %22, %24 : vector<8x128xf32>
    %59 = arith.maximumf %26, %28 : vector<8x128xf32>
    %60 = arith.maximumf %58, %59 : vector<8x128xf32>
    %61 = arith.cmpf oge, %60, %3 : vector<8x128xf32>
    %62 = arith.cmpf ole, %60, %4 : vector<8x128xf32>
    %63 = arith.andi %61, %62 : vector<8x128xi1>
    %64 = arith.andi %57, %63 : vector<8x128xi1>
    %cst_14 = arith.constant 1.000000e+06 : f32
    %65 = vector.broadcast %18 : f32 to vector<8x128xf32>
    %66 = vector.broadcast %cst_14 : f32 to vector<8x128xf32>
    %67 = arith.select %64, %65, %66 : vector<8x128xi1>, vector<8x128xf32>
    %68 = arith.cmpf olt, %67, %7 : vector<8x128xf32>
    %69 = arith.select %68, %67, %7 : vector<8x128xi1>, vector<8x128xf32>
    %70 = arith.select %68, %22, %6 : vector<8x128xi1>, vector<8x128xf32>
    %71 = arith.select %68, %24, %6 : vector<8x128xi1>, vector<8x128xf32>
    %72 = arith.select %68, %26, %6 : vector<8x128xi1>, vector<8x128xf32>
    %73 = arith.select %68, %28, %6 : vector<8x128xi1>, vector<8x128xf32>
    %74 = vector.broadcast %20 : f32 to vector<8x128xf32>
    %75 = arith.select %68, %74, %6 : vector<8x128xi1>, vector<8x128xf32>
    %c1_i32 = arith.constant 1 : i32
    %76 = arith.addi %5, %c1_i32 : i32
    %c0_15 = arith.constant 0 : index
    %77 = arith.index_cast %76 : i32 to index
    %78 = memref.load %arg2[%c0_15, %77] : memref<6x16xf32, #tpu.memory_space<smem>>
    %c1_16 = arith.constant 1 : index
    %79 = arith.index_cast %76 : i32 to index
    %80 = memref.load %arg2[%c1_16, %79] : memref<6x16xf32, #tpu.memory_space<smem>>
    %c2_17 = arith.constant 2 : index
    %81 = arith.index_cast %76 : i32 to index
    %82 = memref.load %arg2[%c2_17, %81] : memref<6x16xf32, #tpu.memory_space<smem>>
    %c3_18 = arith.constant 3 : index
    %83 = arith.index_cast %76 : i32 to index
    %84 = memref.load %arg2[%c3_18, %83] : memref<6x16xf32, #tpu.memory_space<smem>>
    %c4_19 = arith.constant 4 : index
    %85 = arith.index_cast %76 : i32 to index
    %86 = memref.load %arg2[%c4_19, %85] : memref<6x16xf32, #tpu.memory_space<smem>>
    %c5_20 = arith.constant 5 : index
    %87 = arith.index_cast %76 : i32 to index
    %88 = memref.load %arg2[%c5_20, %87] : memref<6x16xf32, #tpu.memory_space<smem>>
    %89 = vector.broadcast %78 : f32 to vector<8x128xf32>
    %90 = arith.subf %0, %89 : vector<8x128xf32>
    %91 = vector.broadcast %80 : f32 to vector<8x128xf32>
    %92 = arith.subf %1, %91 : vector<8x128xf32>
    %93 = vector.broadcast %82 : f32 to vector<8x128xf32>
    %94 = arith.subf %93, %0 : vector<8x128xf32>
    %95 = vector.broadcast %84 : f32 to vector<8x128xf32>
    %96 = arith.subf %95, %1 : vector<8x128xf32>
    %97 = arith.addf %78, %82 : f32
    %cst_21 = arith.constant 5.000000e-01 : f32
    %98 = arith.mulf %97, %cst_21 : f32
    %99 = arith.addf %80, %84 : f32
    %cst_22 = arith.constant 5.000000e-01 : f32
    %100 = arith.mulf %99, %cst_22 : f32
    %101 = vector.broadcast %98 : f32 to vector<8x128xf32>
    %102 = arith.subf %101, %2 : vector<8x128xf32>
    %103 = vector.broadcast %78 : f32 to vector<8x128xf32>
    %104 = arith.maximumf %102, %103 : vector<8x128xf32>
    %105 = vector.broadcast %100 : f32 to vector<8x128xf32>
    %106 = arith.subf %105, %2 : vector<8x128xf32>
    %107 = vector.broadcast %80 : f32 to vector<8x128xf32>
    %108 = arith.maximumf %106, %107 : vector<8x128xf32>
    %109 = vector.broadcast %98 : f32 to vector<8x128xf32>
    %110 = arith.addf %109, %2 : vector<8x128xf32>
    %111 = vector.broadcast %82 : f32 to vector<8x128xf32>
    %112 = arith.minimumf %110, %111 : vector<8x128xf32>
    %113 = vector.broadcast %100 : f32 to vector<8x128xf32>
    %114 = arith.addf %113, %2 : vector<8x128xf32>
    %115 = vector.broadcast %84 : f32 to vector<8x128xf32>
    %116 = arith.minimumf %114, %115 : vector<8x128xf32>
    %117 = arith.subf %0, %104 : vector<8x128xf32>
    %118 = arith.subf %1, %108 : vector<8x128xf32>
    %119 = arith.minimumf %117, %118 : vector<8x128xf32>
    %120 = arith.subf %112, %0 : vector<8x128xf32>
    %121 = arith.subf %116, %1 : vector<8x128xf32>
    %122 = arith.minimumf %120, %121 : vector<8x128xf32>
    %123 = arith.minimumf %119, %122 : vector<8x128xf32>
    %cst_23 = arith.constant 0.000000e+00 : f32
    %124 = vector.broadcast %cst_23 : f32 to vector<8x128xf32>
    %125 = arith.cmpf ogt, %123, %124 : vector<8x128xf32>
    %126 = arith.maximumf %90, %92 : vector<8x128xf32>
    %127 = arith.maximumf %94, %96 : vector<8x128xf32>
    %128 = arith.maximumf %126, %127 : vector<8x128xf32>
    %129 = arith.cmpf oge, %128, %3 : vector<8x128xf32>
    %130 = arith.cmpf ole, %128, %4 : vector<8x128xf32>
    %131 = arith.andi %129, %130 : vector<8x128xi1>
    %132 = arith.andi %125, %131 : vector<8x128xi1>
    %cst_24 = arith.constant 1.000000e+06 : f32
    %133 = vector.broadcast %86 : f32 to vector<8x128xf32>
    %134 = vector.broadcast %cst_24 : f32 to vector<8x128xf32>
    %135 = arith.select %132, %133, %134 : vector<8x128xi1>, vector<8x128xf32>
    %136 = arith.cmpf olt, %135, %69 : vector<8x128xf32>
    %137 = arith.select %136, %135, %69 : vector<8x128xi1>, vector<8x128xf32>
    %138 = arith.select %136, %90, %70 : vector<8x128xi1>, vector<8x128xf32>
    %139 = arith.select %136, %92, %71 : vector<8x128xi1>, vector<8x128xf32>
    %140 = arith.select %136, %94, %72 : vector<8x128xi1>, vector<8x128xf32>
    %141 = arith.select %136, %96, %73 : vector<8x128xi1>, vector<8x128xf32>
    %142 = vector.broadcast %88 : f32 to vector<8x128xf32>
    %143 = arith.select %136, %142, %75 : vector<8x128xi1>, vector<8x128xf32>
    %c2_i32 = arith.constant 2 : i32
    %144 = arith.addi %5, %c2_i32 : i32
    %c0_25 = arith.constant 0 : index
    %145 = arith.index_cast %144 : i32 to index
    %146 = memref.load %arg2[%c0_25, %145] : memref<6x16xf32, #tpu.memory_space<smem>>
    %c1_26 = arith.constant 1 : index
    %147 = arith.index_cast %144 : i32 to index
    %148 = memref.load %arg2[%c1_26, %147] : memref<6x16xf32, #tpu.memory_space<smem>>
    %c2_27 = arith.constant 2 : index
    %149 = arith.index_cast %144 : i32 to index
    %150 = memref.load %arg2[%c2_27, %149] : memref<6x16xf32, #tpu.memory_space<smem>>
    %c3_28 = arith.constant 3 : index
    %151 = arith.index_cast %144 : i32 to index
    %152 = memref.load %arg2[%c3_28, %151] : memref<6x16xf32, #tpu.memory_space<smem>>
    %c4_29 = arith.constant 4 : index
    %153 = arith.index_cast %144 : i32 to index
    %154 = memref.load %arg2[%c4_29, %153] : memref<6x16xf32, #tpu.memory_space<smem>>
    %c5_30 = arith.constant 5 : index
    %155 = arith.index_cast %144 : i32 to index
    %156 = memref.load %arg2[%c5_30, %155] : memref<6x16xf32, #tpu.memory_space<smem>>
    %157 = vector.broadcast %146 : f32 to vector<8x128xf32>
    %158 = arith.subf %0, %157 : vector<8x128xf32>
    %159 = vector.broadcast %148 : f32 to vector<8x128xf32>
    %160 = arith.subf %1, %159 : vector<8x128xf32>
    %161 = vector.broadcast %150 : f32 to vector<8x128xf32>
    %162 = arith.subf %161, %0 : vector<8x128xf32>
    %163 = vector.broadcast %152 : f32 to vector<8x128xf32>
    %164 = arith.subf %163, %1 : vector<8x128xf32>
    %165 = arith.addf %146, %150 : f32
    %cst_31 = arith.constant 5.000000e-01 : f32
    %166 = arith.mulf %165, %cst_31 : f32
    %167 = arith.addf %148, %152 : f32
    %cst_32 = arith.constant 5.000000e-01 : f32
    %168 = arith.mulf %167, %cst_32 : f32
    %169 = vector.broadcast %166 : f32 to vector<8x128xf32>
    %170 = arith.subf %169, %2 : vector<8x128xf32>
    %171 = vector.broadcast %146 : f32 to vector<8x128xf32>
    %172 = arith.maximumf %170, %171 : vector<8x128xf32>
    %173 = vector.broadcast %168 : f32 to vector<8x128xf32>
    %174 = arith.subf %173, %2 : vector<8x128xf32>
    %175 = vector.broadcast %148 : f32 to vector<8x128xf32>
    %176 = arith.maximumf %174, %175 : vector<8x128xf32>
    %177 = vector.broadcast %166 : f32 to vector<8x128xf32>
    %178 = arith.addf %177, %2 : vector<8x128xf32>
    %179 = vector.broadcast %150 : f32 to vector<8x128xf32>
    %180 = arith.minimumf %178, %179 : vector<8x128xf32>
    %181 = vector.broadcast %168 : f32 to vector<8x128xf32>
    %182 = arith.addf %181, %2 : vector<8x128xf32>
    %183 = vector.broadcast %152 : f32 to vector<8x128xf32>
    %184 = arith.minimumf %182, %183 : vector<8x128xf32>
    %185 = arith.subf %0, %172 : vector<8x128xf32>
    %186 = arith.subf %1, %176 : vector<8x128xf32>
    %187 = arith.minimumf %185, %186 : vector<8x128xf32>
    %188 = arith.subf %180, %0 : vector<8x128xf32>
    %189 = arith.subf %184, %1 : vector<8x128xf32>
    %190 = arith.minimumf %188, %189 : vector<8x128xf32>
    %191 = arith.minimumf %187, %190 : vector<8x128xf32>
    %cst_33 = arith.constant 0.000000e+00 : f32
    %192 = vector.broadcast %cst_33 : f32 to vector<8x128xf32>
    %193 = arith.cmpf ogt, %191, %192 : vector<8x128xf32>
    %194 = arith.maximumf %158, %160 : vector<8x128xf32>
    %195 = arith.maximumf %162, %164 : vector<8x128xf32>
    %196 = arith.maximumf %194, %195 : vector<8x128xf32>
    %197 = arith.cmpf oge, %196, %3 : vector<8x128xf32>
    %198 = arith.cmpf ole, %196, %4 : vector<8x128xf32>
    %199 = arith.andi %197, %198 : vector<8x128xi1>
    %200 = arith.andi %193, %199 : vector<8x128xi1>
    %cst_34 = arith.constant 1.000000e+06 : f32
    %201 = vector.broadcast %154 : f32 to vector<8x128xf32>
    %202 = vector.broadcast %cst_34 : f32 to vector<8x128xf32>
    %203 = arith.select %200, %201, %202 : vector<8x128xi1>, vector<8x128xf32>
    %204 = arith.cmpf olt, %203, %137 : vector<8x128xf32>
    %205 = arith.select %204, %203, %137 : vector<8x128xi1>, vector<8x128xf32>
    %206 = arith.select %204, %158, %138 : vector<8x128xi1>, vector<8x128xf32>
    %207 = arith.select %204, %160, %139 : vector<8x128xi1>, vector<8x128xf32>
    %208 = arith.select %204, %162, %140 : vector<8x128xi1>, vector<8x128xf32>
    %209 = arith.select %204, %164, %141 : vector<8x128xi1>, vector<8x128xf32>
    %210 = vector.broadcast %156 : f32 to vector<8x128xf32>
    %211 = arith.select %204, %210, %143 : vector<8x128xi1>, vector<8x128xf32>
    %c3_i32 = arith.constant 3 : i32
    %212 = arith.addi %5, %c3_i32 : i32
    %c0_35 = arith.constant 0 : index
    %213 = arith.index_cast %212 : i32 to index
    %214 = memref.load %arg2[%c0_35, %213] : memref<6x16xf32, #tpu.memory_space<smem>>
    %c1_36 = arith.constant 1 : index
    %215 = arith.index_cast %212 : i32 to index
    %216 = memref.load %arg2[%c1_36, %215] : memref<6x16xf32, #tpu.memory_space<smem>>
    %c2_37 = arith.constant 2 : index
    %217 = arith.index_cast %212 : i32 to index
    %218 = memref.load %arg2[%c2_37, %217] : memref<6x16xf32, #tpu.memory_space<smem>>
    %c3_38 = arith.constant 3 : index
    %219 = arith.index_cast %212 : i32 to index
    %220 = memref.load %arg2[%c3_38, %219] : memref<6x16xf32, #tpu.memory_space<smem>>
    %c4_39 = arith.constant 4 : index
    %221 = arith.index_cast %212 : i32 to index
    %222 = memref.load %arg2[%c4_39, %221] : memref<6x16xf32, #tpu.memory_space<smem>>
    %c5_40 = arith.constant 5 : index
    %223 = arith.index_cast %212 : i32 to index
    %224 = memref.load %arg2[%c5_40, %223] : memref<6x16xf32, #tpu.memory_space<smem>>
    %225 = vector.broadcast %214 : f32 to vector<8x128xf32>
    %226 = arith.subf %0, %225 : vector<8x128xf32>
    %227 = vector.broadcast %216 : f32 to vector<8x128xf32>
    %228 = arith.subf %1, %227 : vector<8x128xf32>
    %229 = vector.broadcast %218 : f32 to vector<8x128xf32>
    %230 = arith.subf %229, %0 : vector<8x128xf32>
    %231 = vector.broadcast %220 : f32 to vector<8x128xf32>
    %232 = arith.subf %231, %1 : vector<8x128xf32>
    %233 = arith.addf %214, %218 : f32
    %cst_41 = arith.constant 5.000000e-01 : f32
    %234 = arith.mulf %233, %cst_41 : f32
    %235 = arith.addf %216, %220 : f32
    %cst_42 = arith.constant 5.000000e-01 : f32
    %236 = arith.mulf %235, %cst_42 : f32
    %237 = vector.broadcast %234 : f32 to vector<8x128xf32>
    %238 = arith.subf %237, %2 : vector<8x128xf32>
    %239 = vector.broadcast %214 : f32 to vector<8x128xf32>
    %240 = arith.maximumf %238, %239 : vector<8x128xf32>
    %241 = vector.broadcast %236 : f32 to vector<8x128xf32>
    %242 = arith.subf %241, %2 : vector<8x128xf32>
    %243 = vector.broadcast %216 : f32 to vector<8x128xf32>
    %244 = arith.maximumf %242, %243 : vector<8x128xf32>
    %245 = vector.broadcast %234 : f32 to vector<8x128xf32>
    %246 = arith.addf %245, %2 : vector<8x128xf32>
    %247 = vector.broadcast %218 : f32 to vector<8x128xf32>
    %248 = arith.minimumf %246, %247 : vector<8x128xf32>
    %249 = vector.broadcast %236 : f32 to vector<8x128xf32>
    %250 = arith.addf %249, %2 : vector<8x128xf32>
    %251 = vector.broadcast %220 : f32 to vector<8x128xf32>
    %252 = arith.minimumf %250, %251 : vector<8x128xf32>
    %253 = arith.subf %0, %240 : vector<8x128xf32>
    %254 = arith.subf %1, %244 : vector<8x128xf32>
    %255 = arith.minimumf %253, %254 : vector<8x128xf32>
    %256 = arith.subf %248, %0 : vector<8x128xf32>
    %257 = arith.subf %252, %1 : vector<8x128xf32>
    %258 = arith.minimumf %256, %257 : vector<8x128xf32>
    %259 = arith.minimumf %255, %258 : vector<8x128xf32>
    %cst_43 = arith.constant 0.000000e+00 : f32
    %260 = vector.broadcast %cst_43 : f32 to vector<8x128xf32>
    %261 = arith.cmpf ogt, %259, %260 : vector<8x128xf32>
    %262 = arith.maximumf %226, %228 : vector<8x128xf32>
    %263 = arith.maximumf %230, %232 : vector<8x128xf32>
    %264 = arith.maximumf %262, %263 : vector<8x128xf32>
    %265 = arith.cmpf oge, %264, %3 : vector<8x128xf32>
    %266 = arith.cmpf ole, %264, %4 : vector<8x128xf32>
    %267 = arith.andi %265, %266 : vector<8x128xi1>
    %268 = arith.andi %261, %267 : vector<8x128xi1>
    %cst_44 = arith.constant 1.000000e+06 : f32
    %269 = vector.broadcast %222 : f32 to vector<8x128xf32>
    %270 = vector.broadcast %cst_44 : f32 to vector<8x128xf32>
    %271 = arith.select %268, %269, %270 : vector<8x128xi1>, vector<8x128xf32>
    %272 = arith.cmpf olt, %271, %205 : vector<8x128xf32>
    %273 = arith.select %272, %271, %205 : vector<8x128xi1>, vector<8x128xf32>
    %274 = arith.select %272, %226, %206 : vector<8x128xi1>, vector<8x128xf32>
    %275 = arith.select %272, %228, %207 : vector<8x128xi1>, vector<8x128xf32>
    %276 = arith.select %272, %230, %208 : vector<8x128xi1>, vector<8x128xf32>
    %277 = arith.select %272, %232, %209 : vector<8x128xi1>, vector<8x128xf32>
    %278 = vector.broadcast %224 : f32 to vector<8x128xf32>
    %279 = arith.select %272, %278, %211 : vector<8x128xi1>, vector<8x128xf32>
    %c4_i32 = arith.constant 4 : i32
    %280 = arith.addi %5, %c4_i32 : i32
    %c0_45 = arith.constant 0 : index
    %281 = arith.index_cast %280 : i32 to index
    %282 = memref.load %arg2[%c0_45, %281] : memref<6x16xf32, #tpu.memory_space<smem>>
    %c1_46 = arith.constant 1 : index
    %283 = arith.index_cast %280 : i32 to index
    %284 = memref.load %arg2[%c1_46, %283] : memref<6x16xf32, #tpu.memory_space<smem>>
    %c2_47 = arith.constant 2 : index
    %285 = arith.index_cast %280 : i32 to index
    %286 = memref.load %arg2[%c2_47, %285] : memref<6x16xf32, #tpu.memory_space<smem>>
    %c3_48 = arith.constant 3 : index
    %287 = arith.index_cast %280 : i32 to index
    %288 = memref.load %arg2[%c3_48, %287] : memref<6x16xf32, #tpu.memory_space<smem>>
    %c4_49 = arith.constant 4 : index
    %289 = arith.index_cast %280 : i32 to index
    %290 = memref.load %arg2[%c4_49, %289] : memref<6x16xf32, #tpu.memory_space<smem>>
    %c5_50 = arith.constant 5 : index
    %291 = arith.index_cast %280 : i32 to index
    %292 = memref.load %arg2[%c5_50, %291] : memref<6x16xf32, #tpu.memory_space<smem>>
    %293 = vector.broadcast %282 : f32 to vector<8x128xf32>
    %294 = arith.subf %0, %293 : vector<8x128xf32>
    %295 = vector.broadcast %284 : f32 to vector<8x128xf32>
    %296 = arith.subf %1, %295 : vector<8x128xf32>
    %297 = vector.broadcast %286 : f32 to vector<8x128xf32>
    %298 = arith.subf %297, %0 : vector<8x128xf32>
    %299 = vector.broadcast %288 : f32 to vector<8x128xf32>
    %300 = arith.subf %299, %1 : vector<8x128xf32>
    %301 = arith.addf %282, %286 : f32
    %cst_51 = arith.constant 5.000000e-01 : f32
    %302 = arith.mulf %301, %cst_51 : f32
    %303 = arith.addf %284, %288 : f32
    %cst_52 = arith.constant 5.000000e-01 : f32
    %304 = arith.mulf %303, %cst_52 : f32
    %305 = vector.broadcast %302 : f32 to vector<8x128xf32>
    %306 = arith.subf %305, %2 : vector<8x128xf32>
    %307 = vector.broadcast %282 : f32 to vector<8x128xf32>
    %308 = arith.maximumf %306, %307 : vector<8x128xf32>
    %309 = vector.broadcast %304 : f32 to vector<8x128xf32>
    %310 = arith.subf %309, %2 : vector<8x128xf32>
    %311 = vector.broadcast %284 : f32 to vector<8x128xf32>
    %312 = arith.maximumf %310, %311 : vector<8x128xf32>
    %313 = vector.broadcast %302 : f32 to vector<8x128xf32>
    %314 = arith.addf %313, %2 : vector<8x128xf32>
    %315 = vector.broadcast %286 : f32 to vector<8x128xf32>
    %316 = arith.minimumf %314, %315 : vector<8x128xf32>
    %317 = vector.broadcast %304 : f32 to vector<8x128xf32>
    %318 = arith.addf %317, %2 : vector<8x128xf32>
    %319 = vector.broadcast %288 : f32 to vector<8x128xf32>
    %320 = arith.minimumf %318, %319 : vector<8x128xf32>
    %321 = arith.subf %0, %308 : vector<8x128xf32>
    %322 = arith.subf %1, %312 : vector<8x128xf32>
    %323 = arith.minimumf %321, %322 : vector<8x128xf32>
    %324 = arith.subf %316, %0 : vector<8x128xf32>
    %325 = arith.subf %320, %1 : vector<8x128xf32>
    %326 = arith.minimumf %324, %325 : vector<8x128xf32>
    %327 = arith.minimumf %323, %326 : vector<8x128xf32>
    %cst_53 = arith.constant 0.000000e+00 : f32
    %328 = vector.broadcast %cst_53 : f32 to vector<8x128xf32>
    %329 = arith.cmpf ogt, %327, %328 : vector<8x128xf32>
    %330 = arith.maximumf %294, %296 : vector<8x128xf32>
    %331 = arith.maximumf %298, %300 : vector<8x128xf32>
    %332 = arith.maximumf %330, %331 : vector<8x128xf32>
    %333 = arith.cmpf oge, %332, %3 : vector<8x128xf32>
    %334 = arith.cmpf ole, %332, %4 : vector<8x128xf32>
    %335 = arith.andi %333, %334 : vector<8x128xi1>
    %336 = arith.andi %329, %335 : vector<8x128xi1>
    %cst_54 = arith.constant 1.000000e+06 : f32
    %337 = vector.broadcast %290 : f32 to vector<8x128xf32>
    %338 = vector.broadcast %cst_54 : f32 to vector<8x128xf32>
    %339 = arith.select %336, %337, %338 : vector<8x128xi1>, vector<8x128xf32>
    %340 = arith.cmpf olt, %339, %273 : vector<8x128xf32>
    %341 = arith.select %340, %339, %273 : vector<8x128xi1>, vector<8x128xf32>
    %342 = arith.select %340, %294, %274 : vector<8x128xi1>, vector<8x128xf32>
    %343 = arith.select %340, %296, %275 : vector<8x128xi1>, vector<8x128xf32>
    %344 = arith.select %340, %298, %276 : vector<8x128xi1>, vector<8x128xf32>
    %345 = arith.select %340, %300, %277 : vector<8x128xi1>, vector<8x128xf32>
    %346 = vector.broadcast %292 : f32 to vector<8x128xf32>
    %347 = arith.select %340, %346, %279 : vector<8x128xi1>, vector<8x128xf32>
    %c5_i32 = arith.constant 5 : i32
    %348 = arith.addi %5, %c5_i32 : i32
    %c0_55 = arith.constant 0 : index
    %349 = arith.index_cast %348 : i32 to index
    %350 = memref.load %arg2[%c0_55, %349] : memref<6x16xf32, #tpu.memory_space<smem>>
    %c1_56 = arith.constant 1 : index
    %351 = arith.index_cast %348 : i32 to index
    %352 = memref.load %arg2[%c1_56, %351] : memref<6x16xf32, #tpu.memory_space<smem>>
    %c2_57 = arith.constant 2 : index
    %353 = arith.index_cast %348 : i32 to index
    %354 = memref.load %arg2[%c2_57, %353] : memref<6x16xf32, #tpu.memory_space<smem>>
    %c3_58 = arith.constant 3 : index
    %355 = arith.index_cast %348 : i32 to index
    %356 = memref.load %arg2[%c3_58, %355] : memref<6x16xf32, #tpu.memory_space<smem>>
    %c4_59 = arith.constant 4 : index
    %357 = arith.index_cast %348 : i32 to index
    %358 = memref.load %arg2[%c4_59, %357] : memref<6x16xf32, #tpu.memory_space<smem>>
    %c5_60 = arith.constant 5 : index
    %359 = arith.index_cast %348 : i32 to index
    %360 = memref.load %arg2[%c5_60, %359] : memref<6x16xf32, #tpu.memory_space<smem>>
    %361 = vector.broadcast %350 : f32 to vector<8x128xf32>
    %362 = arith.subf %0, %361 : vector<8x128xf32>
    %363 = vector.broadcast %352 : f32 to vector<8x128xf32>
    %364 = arith.subf %1, %363 : vector<8x128xf32>
    %365 = vector.broadcast %354 : f32 to vector<8x128xf32>
    %366 = arith.subf %365, %0 : vector<8x128xf32>
    %367 = vector.broadcast %356 : f32 to vector<8x128xf32>
    %368 = arith.subf %367, %1 : vector<8x128xf32>
    %369 = arith.addf %350, %354 : f32
    %cst_61 = arith.constant 5.000000e-01 : f32
    %370 = arith.mulf %369, %cst_61 : f32
    %371 = arith.addf %352, %356 : f32
    %cst_62 = arith.constant 5.000000e-01 : f32
    %372 = arith.mulf %371, %cst_62 : f32
    %373 = vector.broadcast %370 : f32 to vector<8x128xf32>
    %374 = arith.subf %373, %2 : vector<8x128xf32>
    %375 = vector.broadcast %350 : f32 to vector<8x128xf32>
    %376 = arith.maximumf %374, %375 : vector<8x128xf32>
    %377 = vector.broadcast %372 : f32 to vector<8x128xf32>
    %378 = arith.subf %377, %2 : vector<8x128xf32>
    %379 = vector.broadcast %352 : f32 to vector<8x128xf32>
    %380 = arith.maximumf %378, %379 : vector<8x128xf32>
    %381 = vector.broadcast %370 : f32 to vector<8x128xf32>
    %382 = arith.addf %381, %2 : vector<8x128xf32>
    %383 = vector.broadcast %354 : f32 to vector<8x128xf32>
    %384 = arith.minimumf %382, %383 : vector<8x128xf32>
    %385 = vector.broadcast %372 : f32 to vector<8x128xf32>
    %386 = arith.addf %385, %2 : vector<8x128xf32>
    %387 = vector.broadcast %356 : f32 to vector<8x128xf32>
    %388 = arith.minimumf %386, %387 : vector<8x128xf32>
    %389 = arith.subf %0, %376 : vector<8x128xf32>
    %390 = arith.subf %1, %380 : vector<8x128xf32>
    %391 = arith.minimumf %389, %390 : vector<8x128xf32>
    %392 = arith.subf %384, %0 : vector<8x128xf32>
    %393 = arith.subf %388, %1 : vector<8x128xf32>
    %394 = arith.minimumf %392, %393 : vector<8x128xf32>
    %395 = arith.minimumf %391, %394 : vector<8x128xf32>
    %cst_63 = arith.constant 0.000000e+00 : f32
    %396 = vector.broadcast %cst_63 : f32 to vector<8x128xf32>
    %397 = arith.cmpf ogt, %395, %396 : vector<8x128xf32>
    %398 = arith.maximumf %362, %364 : vector<8x128xf32>
    %399 = arith.maximumf %366, %368 : vector<8x128xf32>
    %400 = arith.maximumf %398, %399 : vector<8x128xf32>
    %401 = arith.cmpf oge, %400, %3 : vector<8x128xf32>
    %402 = arith.cmpf ole, %400, %4 : vector<8x128xf32>
    %403 = arith.andi %401, %402 : vector<8x128xi1>
    %404 = arith.andi %397, %403 : vector<8x128xi1>
    %cst_64 = arith.constant 1.000000e+06 : f32
    %405 = vector.broadcast %358 : f32 to vector<8x128xf32>
    %406 = vector.broadcast %cst_64 : f32 to vector<8x128xf32>
    %407 = arith.select %404, %405, %406 : vector<8x128xi1>, vector<8x128xf32>
    %408 = arith.cmpf olt, %407, %341 : vector<8x128xf32>
    %409 = arith.select %408, %407, %341 : vector<8x128xi1>, vector<8x128xf32>
    %410 = arith.select %408, %362, %342 : vector<8x128xi1>, vector<8x128xf32>
    %411 = arith.select %408, %364, %343 : vector<8x128xi1>, vector<8x128xf32>
    %412 = arith.select %408, %366, %344 : vector<8x128xi1>, vector<8x128xf32>
    %413 = arith.select %408, %368, %345 : vector<8x128xi1>, vector<8x128xf32>
    %414 = vector.broadcast %360 : f32 to vector<8x128xf32>
    %415 = arith.select %408, %414, %347 : vector<8x128xi1>, vector<8x128xf32>
    %c6_i32 = arith.constant 6 : i32
    %416 = arith.addi %5, %c6_i32 : i32
    %c0_65 = arith.constant 0 : index
    %417 = arith.index_cast %416 : i32 to index
    %418 = memref.load %arg2[%c0_65, %417] : memref<6x16xf32, #tpu.memory_space<smem>>
    %c1_66 = arith.constant 1 : index
    %419 = arith.index_cast %416 : i32 to index
    %420 = memref.load %arg2[%c1_66, %419] : memref<6x16xf32, #tpu.memory_space<smem>>
    %c2_67 = arith.constant 2 : index
    %421 = arith.index_cast %416 : i32 to index
    %422 = memref.load %arg2[%c2_67, %421] : memref<6x16xf32, #tpu.memory_space<smem>>
    %c3_68 = arith.constant 3 : index
    %423 = arith.index_cast %416 : i32 to index
    %424 = memref.load %arg2[%c3_68, %423] : memref<6x16xf32, #tpu.memory_space<smem>>
    %c4_69 = arith.constant 4 : index
    %425 = arith.index_cast %416 : i32 to index
    %426 = memref.load %arg2[%c4_69, %425] : memref<6x16xf32, #tpu.memory_space<smem>>
    %c5_70 = arith.constant 5 : index
    %427 = arith.index_cast %416 : i32 to index
    %428 = memref.load %arg2[%c5_70, %427] : memref<6x16xf32, #tpu.memory_space<smem>>
    %429 = vector.broadcast %418 : f32 to vector<8x128xf32>
    %430 = arith.subf %0, %429 : vector<8x128xf32>
    %431 = vector.broadcast %420 : f32 to vector<8x128xf32>
    %432 = arith.subf %1, %431 : vector<8x128xf32>
    %433 = vector.broadcast %422 : f32 to vector<8x128xf32>
    %434 = arith.subf %433, %0 : vector<8x128xf32>
    %435 = vector.broadcast %424 : f32 to vector<8x128xf32>
    %436 = arith.subf %435, %1 : vector<8x128xf32>
    %437 = arith.addf %418, %422 : f32
    %cst_71 = arith.constant 5.000000e-01 : f32
    %438 = arith.mulf %437, %cst_71 : f32
    %439 = arith.addf %420, %424 : f32
    %cst_72 = arith.constant 5.000000e-01 : f32
    %440 = arith.mulf %439, %cst_72 : f32
    %441 = vector.broadcast %438 : f32 to vector<8x128xf32>
    %442 = arith.subf %441, %2 : vector<8x128xf32>
    %443 = vector.broadcast %418 : f32 to vector<8x128xf32>
    %444 = arith.maximumf %442, %443 : vector<8x128xf32>
    %445 = vector.broadcast %440 : f32 to vector<8x128xf32>
    %446 = arith.subf %445, %2 : vector<8x128xf32>
    %447 = vector.broadcast %420 : f32 to vector<8x128xf32>
    %448 = arith.maximumf %446, %447 : vector<8x128xf32>
    %449 = vector.broadcast %438 : f32 to vector<8x128xf32>
    %450 = arith.addf %449, %2 : vector<8x128xf32>
    %451 = vector.broadcast %422 : f32 to vector<8x128xf32>
    %452 = arith.minimumf %450, %451 : vector<8x128xf32>
    %453 = vector.broadcast %440 : f32 to vector<8x128xf32>
    %454 = arith.addf %453, %2 : vector<8x128xf32>
    %455 = vector.broadcast %424 : f32 to vector<8x128xf32>
    %456 = arith.minimumf %454, %455 : vector<8x128xf32>
    %457 = arith.subf %0, %444 : vector<8x128xf32>
    %458 = arith.subf %1, %448 : vector<8x128xf32>
    %459 = arith.minimumf %457, %458 : vector<8x128xf32>
    %460 = arith.subf %452, %0 : vector<8x128xf32>
    %461 = arith.subf %456, %1 : vector<8x128xf32>
    %462 = arith.minimumf %460, %461 : vector<8x128xf32>
    %463 = arith.minimumf %459, %462 : vector<8x128xf32>
    %cst_73 = arith.constant 0.000000e+00 : f32
    %464 = vector.broadcast %cst_73 : f32 to vector<8x128xf32>
    %465 = arith.cmpf ogt, %463, %464 : vector<8x128xf32>
    %466 = arith.maximumf %430, %432 : vector<8x128xf32>
    %467 = arith.maximumf %434, %436 : vector<8x128xf32>
    %468 = arith.maximumf %466, %467 : vector<8x128xf32>
    %469 = arith.cmpf oge, %468, %3 : vector<8x128xf32>
    %470 = arith.cmpf ole, %468, %4 : vector<8x128xf32>
    %471 = arith.andi %469, %470 : vector<8x128xi1>
    %472 = arith.andi %465, %471 : vector<8x128xi1>
    %cst_74 = arith.constant 1.000000e+06 : f32
    %473 = vector.broadcast %426 : f32 to vector<8x128xf32>
    %474 = vector.broadcast %cst_74 : f32 to vector<8x128xf32>
    %475 = arith.select %472, %473, %474 : vector<8x128xi1>, vector<8x128xf32>
    %476 = arith.cmpf olt, %475, %409 : vector<8x128xf32>
    %477 = arith.select %476, %475, %409 : vector<8x128xi1>, vector<8x128xf32>
    %478 = arith.select %476, %430, %410 : vector<8x128xi1>, vector<8x128xf32>
    %479 = arith.select %476, %432, %411 : vector<8x128xi1>, vector<8x128xf32>
    %480 = arith.select %476, %434, %412 : vector<8x128xi1>, vector<8x128xf32>
    %481 = arith.select %476, %436, %413 : vector<8x128xi1>, vector<8x128xf32>
    %482 = vector.broadcast %428 : f32 to vector<8x128xf32>
    %483 = arith.select %476, %482, %415 : vector<8x128xi1>, vector<8x128xf32>
    %c7_i32 = arith.constant 7 : i32
    %484 = arith.addi %5, %c7_i32 : i32
    %c0_75 = arith.constant 0 : index
    %485 = arith.index_cast %484 : i32 to index
    %486 = memref.load %arg2[%c0_75, %485] : memref<6x16xf32, #tpu.memory_space<smem>>
    %c1_76 = arith.constant 1 : index
    %487 = arith.index_cast %484 : i32 to index
    %488 = memref.load %arg2[%c1_76, %487] : memref<6x16xf32, #tpu.memory_space<smem>>
    %c2_77 = arith.constant 2 : index
    %489 = arith.index_cast %484 : i32 to index
    %490 = memref.load %arg2[%c2_77, %489] : memref<6x16xf32, #tpu.memory_space<smem>>
    %c3_78 = arith.constant 3 : index
    %491 = arith.index_cast %484 : i32 to index
    %492 = memref.load %arg2[%c3_78, %491] : memref<6x16xf32, #tpu.memory_space<smem>>
    %c4_79 = arith.constant 4 : index
    %493 = arith.index_cast %484 : i32 to index
    %494 = memref.load %arg2[%c4_79, %493] : memref<6x16xf32, #tpu.memory_space<smem>>
    %c5_80 = arith.constant 5 : index
    %495 = arith.index_cast %484 : i32 to index
    %496 = memref.load %arg2[%c5_80, %495] : memref<6x16xf32, #tpu.memory_space<smem>>
    %497 = vector.broadcast %486 : f32 to vector<8x128xf32>
    %498 = arith.subf %0, %497 : vector<8x128xf32>
    %499 = vector.broadcast %488 : f32 to vector<8x128xf32>
    %500 = arith.subf %1, %499 : vector<8x128xf32>
    %501 = vector.broadcast %490 : f32 to vector<8x128xf32>
    %502 = arith.subf %501, %0 : vector<8x128xf32>
    %503 = vector.broadcast %492 : f32 to vector<8x128xf32>
    %504 = arith.subf %503, %1 : vector<8x128xf32>
    %505 = arith.addf %486, %490 : f32
    %cst_81 = arith.constant 5.000000e-01 : f32
    %506 = arith.mulf %505, %cst_81 : f32
    %507 = arith.addf %488, %492 : f32
    %cst_82 = arith.constant 5.000000e-01 : f32
    %508 = arith.mulf %507, %cst_82 : f32
    %509 = vector.broadcast %506 : f32 to vector<8x128xf32>
    %510 = arith.subf %509, %2 : vector<8x128xf32>
    %511 = vector.broadcast %486 : f32 to vector<8x128xf32>
    %512 = arith.maximumf %510, %511 : vector<8x128xf32>
    %513 = vector.broadcast %508 : f32 to vector<8x128xf32>
    %514 = arith.subf %513, %2 : vector<8x128xf32>
    %515 = vector.broadcast %488 : f32 to vector<8x128xf32>
    %516 = arith.maximumf %514, %515 : vector<8x128xf32>
    %517 = vector.broadcast %506 : f32 to vector<8x128xf32>
    %518 = arith.addf %517, %2 : vector<8x128xf32>
    %519 = vector.broadcast %490 : f32 to vector<8x128xf32>
    %520 = arith.minimumf %518, %519 : vector<8x128xf32>
    %521 = vector.broadcast %508 : f32 to vector<8x128xf32>
    %522 = arith.addf %521, %2 : vector<8x128xf32>
    %523 = vector.broadcast %492 : f32 to vector<8x128xf32>
    %524 = arith.minimumf %522, %523 : vector<8x128xf32>
    %525 = arith.subf %0, %512 : vector<8x128xf32>
    %526 = arith.subf %1, %516 : vector<8x128xf32>
    %527 = arith.minimumf %525, %526 : vector<8x128xf32>
    %528 = arith.subf %520, %0 : vector<8x128xf32>
    %529 = arith.subf %524, %1 : vector<8x128xf32>
    %530 = arith.minimumf %528, %529 : vector<8x128xf32>
    %531 = arith.minimumf %527, %530 : vector<8x128xf32>
    %cst_83 = arith.constant 0.000000e+00 : f32
    %532 = vector.broadcast %cst_83 : f32 to vector<8x128xf32>
    %533 = arith.cmpf ogt, %531, %532 : vector<8x128xf32>
    %534 = arith.maximumf %498, %500 : vector<8x128xf32>
    %535 = arith.maximumf %502, %504 : vector<8x128xf32>
    %536 = arith.maximumf %534, %535 : vector<8x128xf32>
    %537 = arith.cmpf oge, %536, %3 : vector<8x128xf32>
    %538 = arith.cmpf ole, %536, %4 : vector<8x128xf32>
    %539 = arith.andi %537, %538 : vector<8x128xi1>
    %540 = arith.andi %533, %539 : vector<8x128xi1>
    %cst_84 = arith.constant 1.000000e+06 : f32
    %541 = vector.broadcast %494 : f32 to vector<8x128xf32>
    %542 = vector.broadcast %cst_84 : f32 to vector<8x128xf32>
    %543 = arith.select %540, %541, %542 : vector<8x128xi1>, vector<8x128xf32>
    %544 = arith.cmpf olt, %543, %477 : vector<8x128xf32>
    %545 = arith.select %544, %543, %477 : vector<8x128xi1>, vector<8x128xf32>
    %546 = arith.select %544, %498, %478 : vector<8x128xi1>, vector<8x128xf32>
    %547 = arith.select %544, %500, %479 : vector<8x128xi1>, vector<8x128xf32>
    %548 = arith.select %544, %502, %480 : vector<8x128xi1>, vector<8x128xf32>
    %549 = arith.select %544, %504, %481 : vector<8x128xi1>, vector<8x128xf32>
    %550 = vector.broadcast %496 : f32 to vector<8x128xf32>
    %551 = arith.select %544, %550, %483 : vector<8x128xi1>, vector<8x128xf32>
    %c8_i32_85 = arith.constant 8 : i32
    %cst_86 = arith.constant 1.000000e+06 : f32
    %552 = vector.broadcast %cst_86 : f32 to vector<8x128xf32>
    %553 = arith.cmpf oge, %545, %552 : vector<8x128xf32>
    %cst_87 = arith.constant 0.000000e+00 : f32
    %554 = vector.broadcast %cst_87 : f32 to vector<8x128xf32>
    %555 = arith.select %553, %554, %551 : vector<8x128xi1>, vector<8x128xf32>
    %556 = arith.fptosi %555 : vector<8x128xf32> to vector<8x128xi32>
    %c0_88 = arith.constant 0 : index
    %c0_89 = arith.constant 0 : index
    %c0_90 = arith.constant 0 : index
    %557 = vector.load %arg8[%c0_88, %c0_89, %c0_90] : memref<1x8x128xi32, #tpu.memory_space<vmem>>, vector<1x8x128xi32>
    %558 = vector.shape_cast %557 : vector<1x8x128xi32> to vector<8x128xi32>
    %559 = vector.shape_cast %556 : vector<8x128xi32> to vector<1x8x128xi32>
    tpu.vector_store %arg8[%c0_88, %c0_89, %c0_90], %559 {strides = array<i32>} : memref<1x8x128xi32, #tpu.memory_space<vmem>>, vector<1x8x128xi32>,
    %c0_91 = arith.constant 0 : index
    %c0_92 = arith.constant 0 : index
    %c0_93 = arith.constant 0 : index
    %c0_94 = arith.constant 0 : index
    %560 = vector.load %arg9[%c0_91, %c0_92, %c0_93, %c0_94] : memref<4x1x8x128xf32, #tpu.memory_space<vmem>>, vector<1x1x8x128xf32>
    %561 = vector.shape_cast %560 : vector<1x1x8x128xf32> to vector<8x128xf32>
    %562 = vector.shape_cast %546 : vector<8x128xf32> to vector<1x1x8x128xf32>
    tpu.vector_store %arg9[%c0_91, %c0_92, %c0_93, %c0_94], %562 {strides = array<i32>} : memref<4x1x8x128xf32, #tpu.memory_space<vmem>>, vector<1x1x8x128xf32>,
    %c1_95 = arith.constant 1 : index
    %c0_96 = arith.constant 0 : index
    %c0_97 = arith.constant 0 : index
    %c0_98 = arith.constant 0 : index
    %563 = vector.load %arg9[%c1_95, %c0_96, %c0_97, %c0_98] : memref<4x1x8x128xf32, #tpu.memory_space<vmem>>, vector<1x1x8x128xf32>
    %564 = vector.shape_cast %563 : vector<1x1x8x128xf32> to vector<8x128xf32>
    %565 = vector.shape_cast %547 : vector<8x128xf32> to vector<1x1x8x128xf32>
    tpu.vector_store %arg9[%c1_95, %c0_96, %c0_97, %c0_98], %565 {strides = array<i32>} : memref<4x1x8x128xf32, #tpu.memory_space<vmem>>, vector<1x1x8x128xf32>,
    %c2_99 = arith.constant 2 : index
    %c0_100 = arith.constant 0 : index
    %c0_101 = arith.constant 0 : index
    %c0_102 = arith.constant 0 : index
    %566 = vector.load %arg9[%c2_99, %c0_100, %c0_101, %c0_102] : memref<4x1x8x128xf32, #tpu.memory_space<vmem>>, vector<1x1x8x128xf32>
    %567 = vector.shape_cast %566 : vector<1x1x8x128xf32> to vector<8x128xf32>
    %568 = vector.shape_cast %548 : vector<8x128xf32> to vector<1x1x8x128xf32>
    tpu.vector_store %arg9[%c2_99, %c0_100, %c0_101, %c0_102], %568 {strides = array<i32>} : memref<4x1x8x128xf32, #tpu.memory_space<vmem>>, vector<1x1x8x128xf32>,
    %c3_103 = arith.constant 3 : index
    %c0_104 = arith.constant 0 : index
    %c0_105 = arith.constant 0 : index
    %c0_106 = arith.constant 0 : index
    %569 = vector.load %arg9[%c3_103, %c0_104, %c0_105, %c0_106] : memref<4x1x8x128xf32, #tpu.memory_space<vmem>>, vector<1x1x8x128xf32>
    %570 = vector.shape_cast %569 : vector<1x1x8x128xf32> to vector<8x128xf32>
    %571 = vector.shape_cast %549 : vector<8x128xf32> to vector<1x1x8x128xf32>
    tpu.vector_store %arg9[%c3_103, %c0_104, %c0_105, %c0_106], %571 {strides = array<i32>} : memref<4x1x8x128xf32, #tpu.memory_space<vmem>>, vector<1x1x8x128xf32>,
    return
  }
  func.func @transform_0(%arg0: i32, %arg1: i32) -> (i32, i32) {
    %c0_i32 = arith.constant 0 : i32
    %c0_i32_0 = arith.constant 0 : i32
    %c0_i32_1 = arith.constant 0 : i32
    return %c0_i32, %c0_i32_0 : i32, i32
  }
  func.func @transform_1(%arg0: i32, %arg1: i32) -> (i32, i32) {
    %c0_i32 = arith.constant 0 : i32
    %c0_i32_0 = arith.constant 0 : i32
    return %arg1, %c0_i32 : i32, i32
  }
  func.func @transform_2(%arg0: i32, %arg1: i32) -> (i32, i32) {
    %c0_i32 = arith.constant 0 : i32
    %c0_i32_0 = arith.constant 0 : i32
    return %arg1, %c0_i32 : i32, i32
  }
  func.func @transform_3(%arg0: i32, %arg1: i32) -> (i32, i32) {
    %c0_i32 = arith.constant 0 : i32
    %c0_i32_0 = arith.constant 0 : i32
    return %arg1, %c0_i32 : i32, i32
  }
  func.func @transform_4(%arg0: i32, %arg1: i32) -> (i32, i32) {
    %c0_i32 = arith.constant 0 : i32
    %c0_i32_0 = arith.constant 0 : i32
    return %arg1, %c0_i32 : i32, i32
  }
  func.func @transform_5(%arg0: i32, %arg1: i32) -> (i32, i32) {
    %c0_i32 = arith.constant 0 : i32
    %c0_i32_0 = arith.constant 0 : i32
    return %arg1, %c0_i32 : i32, i32
  }
  func.func @transform_6(%arg0: i32, %arg1: i32) -> (i32, i32, i32) {
    %c0_i32 = arith.constant 0 : i32
    %c0_i32_0 = arith.constant 0 : i32
    return %arg0, %arg1, %c0_i32 : i32, i32, i32
  }
  func.func @transform_7(%arg0: i32, %arg1: i32) -> (i32, i32, i32, i32) {
    %c0_i32 = arith.constant 0 : i32
    %c0_i32_0 = arith.constant 0 : i32
    %c0_i32_1 = arith.constant 0 : i32
    return %c0_i32, %arg0, %arg1, %c0_i32_0 : i32, i32, i32, i32
  }
}

</mosaic_0001>

<llo_original>
// kernel: tpu_custom_call.1
$region0: #{tpu_custom_call.1}
  #allocation0 [shape = 'u32[]', space=smem, size = 0x4, offset = 0x4, fixed_abs, tag = 'smem constant byte address 0x4 - core index']
  #allocation1 [shape = 'u32[144,128]{1,0:T(1,128)}', space=vmem, size = 0x12000, scoped, tag = 'internal scratch']
  %s0 = inlined_call_operand.hbm [shape: f32[6,16], index: 0, kind: input, shape index: {}]
  %s1 = inlined_call_operand.hbm [shape: f32[8,128], index: 1, kind: input, shape index: {}]
  %s2 = inlined_call_operand.hbm [shape: f32[8,128], index: 2, kind: input, shape index: {}]
  %s3 = inlined_call_operand.vmem [shape: f32[8,128], index: 3, kind: input, shape index: {}]
  %s4 = inlined_call_operand.hbm [shape: f32[8,128], index: 4, kind: input, shape index: {}]
  %s5 = inlined_call_operand.vmem [shape: f32[8,128], index: 5, kind: input, shape index: {}]
  %s6 = inlined_call_operand.hbm [shape: s32[2,8,128], index: 6, kind: output, shape index: {0}]
  %s7 = inlined_call_operand.hbm [shape: f32[4,2,8,128], index: 7, kind: output, shape index: {1}]
  %8 = xla_tuple %s6, %s7
  %s9 = sld [smem:[#allocation0]]
  $region81: #{tpu_custom_call.1} parent=0
    _
  %s11 = ssub.s32 1, %s9
  %s12 = scalar_select 0, %s11, %s9
  $region1: #{tpu_custom_call.1} parent=0
    #allocation2 [shape = 'u8[4096]{0}', space=smem, size = 0x1000, scoped, tag = 'input window, operand 0, single buffered']
    #allocation3 [shape = 's32[2]{0}', space=sflag, size = 0x8, scoped, tag = 'scoped memory for tpu_custom_call.1']
    #allocation4 [shape = 's32[2]{0}', space=sflag, size = 0x8, scoped, tag = 'scoped memory for tpu_custom_call.1']
    #allocation5 [shape = 's32[2]{0}', space=sflag, size = 0x8, scoped, tag = 'scoped memory for tpu_custom_call.1']
    #allocation6 [shape = 'u8[4096]{0}', space=vmem, size = 0x1000, scoped, tag = 'input window, operand 1, single buffered']
    #allocation7 [shape = 'u8[4096]{0}', space=vmem, size = 0x1000, scoped, tag = 'input window, operand 2, single buffered']
    #allocation8 [shape = 's32[1]{0}', space=sflag, size = 0x4, scoped, tag = 'scoped memory for tpu_custom_call.1']
    #allocation9 [shape = 'u8[4096]{0}', space=vmem, size = 0x1000, scoped, tag = 'input window, operand 4, single buffered']
    #allocation10 [shape = 'u8[8192]{0}', space=vmem, size = 0x2000, scoped, tag = 'output window, operand 0']
    #allocation11 [shape = 'u8[32768]{0}', space=vmem, size = 0x8000, scoped, tag = 'output window, operand 1']
    #allocation12 [shape = 's32[2]{0}', space=sflag, size = 0x8, scoped, tag = 'scoped memory for tpu_custom_call.1']
    %13 = vsyncpa [#allocation5], 0
    %14 = vsyncpa [#allocation3], 0
    %15 = vsyncpa [#allocation8], 0
    %16 = vsyncpa [#allocation4], 0
    %s17 = scalar_lea.sflag [#allocation4], 1
    %18 = vsyncpa %s17, 0
    %19 = vsyncpa [#allocation12], 0
    %s20 = scalar_lea.sflag [#allocation12], 1
    %21 = vsyncpa %s20, 0
    loop: start=0, step=1, limit=4
    $region2: #{tpu_custom_call.1} parent=1 // loop_pre_header
      _
    $region3: #{tpu_custom_call.1} parent=1 // loop_header
      %s23 = sphi 0, %s27
      %p24 = scmp.ge.s32.totalorder %s23, 4
      %s30 = sphi 0, %s42
      %s31 = sphi 0, %s38
      %s32 = sphi 0, %s30
      %s33 = sphi 0, %s31
      %s34 = sphi 0, %s32
      %s35 = sphi 0, %s33
      %s43 = sphi 0, %s43
      %s45 = sphi 0, %s43
      %s46 = sphi 0, %s45
      %s60 = sphi 0, %s46
      %s66 = sphi 0, %s68
      %s69 = sphi 0, %s66
      %s70 = sphi 0, %s69
      %s86 = sphi 0, %s70
      %s92 = sphi 0, %s94
      %s95 = sphi 0, %s92
      %s96 = sphi 0, %s95
      %s112 = sphi 0, %s96
      %s118 = sphi 0, %s120
      %s121 = sphi 0, %s118
      %s122 = sphi 0, %s121
      %s138 = sphi 0, %s122
      %s144 = sphi 0, %s146
      %s147 = sphi 0, %s144
      %s148 = sphi 0, %s147
      %s164 = sphi 0, %s148
      %s170 = sphi 0, %s172
      %s173 = sphi 0, %s170
      %s174 = sphi 0, %s173
      %s190 = sphi 0, %s174
      %s198 = sphi 0, %s200
      %s201 = sphi 0, %s198
      %s202 = sphi 0, %s201
      %s218 = sphi 0, %s202
      %s226 = sphi 0, %s228
      %s229 = sphi 0, %s226
      %s230 = sphi 0, %s229
      %s246 = sphi 0, %s230
    $region4: #{tpu_custom_call.1} parent=1 // loop_header_branch
      %26 = sbr.rel (%p24) target = $region8
    $region5: #{tpu_custom_call.1} parent=1 // loop_body
      %s28 = ssub.s32 %s23, 1
      %s29 = ssub.s32 %s23, 2
      %s36 = sadd.s32 1, %s31
      %p37 = scmp.ge.s32.totalorder %s36, 1
      %s38 = scalar_select %p37, 0, %s36
      %s39 = sadd.s32 1, %s30
      %s40 = scalar_select %p37, %s39, %s30
      %p41 = scmp.ge.s32.totalorder %s40, 2
      %s42 = scalar_select %p41, 0, %s40
      %s44 = sadd.s32 %s43, 1
      %p47 = scmp.eq.s32.totalorder %s23, 1
      %p48 = scmp.ne.s32.totalorder %s43, %s45
      %p49 = scmp.eq.s32.totalorder %s23, 0
      %p50 = por %p48, %p49
      %p51 = scmp.ne.s32.totalorder %s43, %s45
      %p52 = scmp.eq.s32.totalorder %s28, 1
      %p53 = por %p51, %p52
      %p54 = scmp.ne.s32.totalorder %s45, %s46
      %p55 = scmp.eq.s32.totalorder %s28, 0
      %p56 = por %p54, %p55
      %p57 = scmp.ne.s32.totalorder %s45, %s46
      %p58 = scmp.eq.s32.totalorder %s29, 1
      %p59 = por %p57, %p58
      %p61 = scmp.ne.s32.totalorder %s46, %s60
      %p62 = scmp.eq.s32.totalorder %s29, 0
      %p63 = por %p61, %p62
      %s64 = ssub.s32 %s31, %s38
      %p65 = scmp.eq.s32.totalorder %s64, 0
      %s67 = sadd.s32 %s66, 1
      %s68 = scalar_select %p65, %s66, %s67
      %p71 = pneg %p65
      %p72 = scmp.eq.s32.totalorder %s23, 1
      %p73 = por %p71, %p72
      %p74 = scmp.ne.s32.totalorder %s66, %s69
      %p75 = scmp.eq.s32.totalorder %s23, 0
      %p76 = por %p74, %p75
      %p77 = scmp.ne.s32.totalorder %s66, %s69
      %p78 = scmp.eq.s32.totalorder %s28, 1
      %p79 = por %p77, %p78
      %p80 = scmp.ne.s32.totalorder %s69, %s70
      %p81 = scmp.eq.s32.totalorder %s28, 0
      %p82 = por %p80, %p81
      %p83 = scmp.ne.s32.totalorder %s69, %s70
      %p84 = scmp.eq.s32.totalorder %s29, 1
      %p85 = por %p83, %p84
      %p87 = scmp.ne.s32.totalorder %s70, %s86
      %p88 = scmp.eq.s32.totalorder %s29, 0
      %p89 = por %p87, %p88
      %s90 = ssub.s32 %s31, %s38
      %p91 = scmp.eq.s32.totalorder %s90, 0
      %s93 = sadd.s32 %s92, 1
      %s94 = scalar_select %p91, %s92, %s93
      %p97 = pneg %p91
      %p98 = scmp.eq.s32.totalorder %s23, 1
      %p99 = por %p97, %p98
      %p100 = scmp.ne.s32.totalorder %s92, %s95
      %p101 = scmp.eq.s32.totalorder %s23, 0
      %p102 = por %p100, %p101
      %p103 = scmp.ne.s32.totalorder %s92, %s95
      %p104 = scmp.eq.s32.totalorder %s28, 1
      %p105 = por %p103, %p104
      %p106 = scmp.ne.s32.totalorder %s95, %s96
      %p107 = scmp.eq.s32.totalorder %s28, 0
      %p108 = por %p106, %p107
      %p109 = scmp.ne.s32.totalorder %s95, %s96
      %p110 = scmp.eq.s32.totalorder %s29, 1
      %p111 = por %p109, %p110
      %p113 = scmp.ne.s32.totalorder %s96, %s112
      %p114 = scmp.eq.s32.totalorder %s29, 0
      %p115 = por %p113, %p114
      %s116 = ssub.s32 %s31, %s38
      %p117 = scmp.eq.s32.totalorder %s116, 0
      %s119 = sadd.s32 %s118, 1
      %s120 = scalar_select %p117, %s118, %s119
      %p123 = pneg %p117
      %p124 = scmp.eq.s32.totalorder %s23, 1
      %p125 = por %p123, %p124
      %p126 = scmp.ne.s32.totalorder %s118, %s121
      %p127 = scmp.eq.s32.totalorder %s23, 0
      %p128 = por %p126, %p127
      %p129 = scmp.ne.s32.totalorder %s118, %s121
      %p130 = scmp.eq.s32.totalorder %s28, 1
      %p131 = por %p129, %p130
      %p132 = scmp.ne.s32.totalorder %s121, %s122
      %p133 = scmp.eq.s32.totalorder %s28, 0
      %p134 = por %p132, %p133
      %p135 = scmp.ne.s32.totalorder %s121, %s122
      %p136 = scmp.eq.s32.totalorder %s29, 1
      %p137 = por %p135, %p136
      %p139 = scmp.ne.s32.totalorder %s122, %s138
      %p140 = scmp.eq.s32.totalorder %s29, 0
      %p141 = por %p139, %p140
      %s142 = ssub.s32 %s31, %s38
      %p143 = scmp.eq.s32.totalorder %s142, 0
      %s145 = sadd.s32 %s144, 1
      %s146 = scalar_select %p143, %s144, %s145
      %p149 = pneg %p143
      %p150 = scmp.eq.s32.totalorder %s23, 1
      %p151 = por %p149, %p150
      %p152 = scmp.ne.s32.totalorder %s144, %s147
      %p153 = scmp.eq.s32.totalorder %s23, 0
      %p154 = por %p152, %p153
      %p155 = scmp.ne.s32.totalorder %s144, %s147
      %p156 = scmp.eq.s32.totalorder %s28, 1
      %p157 = por %p155, %p156
      %p158 = scmp.ne.s32.totalorder %s147, %s148
      %p159 = scmp.eq.s32.totalorder %s28, 0
      %p160 = por %p158, %p159
      %p161 = scmp.ne.s32.totalorder %s147, %s148
      %p162 = scmp.eq.s32.totalorder %s29, 1
      %p163 = por %p161, %p162
      %p165 = scmp.ne.s32.totalorder %s148, %s164
      %p166 = scmp.eq.s32.totalorder %s29, 0
      %p167 = por %p165, %p166
      %s168 = ssub.s32 %s31, %s38
      %p169 = scmp.eq.s32.totalorder %s168, 0
      %s171 = sadd.s32 %s170, 1
      %s172 = scalar_select %p169, %s170, %s171
      %p175 = pneg %p169
      %p176 = scmp.eq.s32.totalorder %s23, 1
      %p177 = por %p175, %p176
      %p178 = scmp.ne.s32.totalorder %s170, %s173
      %p179 = scmp.eq.s32.totalorder %s23, 0
      %p180 = por %p178, %p179
      %p181 = scmp.ne.s32.totalorder %s170, %s173
      %p182 = scmp.eq.s32.totalorder %s28, 1
      %p183 = por %p181, %p182
      %p184 = scmp.ne.s32.totalorder %s173, %s174
      %p185 = scmp.eq.s32.totalorder %s28, 0
      %p186 = por %p184, %p185
      %p187 = scmp.ne.s32.totalorder %s173, %s174
      %p188 = scmp.eq.s32.totalorder %s29, 1
      %p189 = por %p187, %p188
      %p191 = scmp.ne.s32.totalorder %s174, %s190
      %p192 = scmp.eq.s32.totalorder %s29, 0
      %p193 = por %p191, %p192
      %s194 = ssub.s32 %s30, %s42
      %s195 = ssub.s32 %s31, %s38
      %s196 = sor.u32 %s194, %s195
      %p197 = scmp.eq.s32.totalorder %s196, 0
      %s199 = sadd.s32 %s198, 1
      %s200 = scalar_select %p197, %s198, %s199
      %p203 = pneg %p197
      %p204 = scmp.eq.s32.totalorder %s23, 1
      %p205 = por %p203, %p204
      %p206 = scmp.ne.s32.totalorder %s198, %s201
      %p207 = scmp.eq.s32.totalorder %s23, 0
      %p208 = por %p206, %p207
      %p209 = scmp.ne.s32.totalorder %s198, %s201
      %p210 = scmp.eq.s32.totalorder %s28, 1
      %p211 = por %p209, %p210
      %p212 = scmp.ne.s32.totalorder %s201, %s202
      %p213 = scmp.eq.s32.totalorder %s28, 0
      %p214 = por %p212, %p213
      %p215 = scmp.ne.s32.totalorder %s201, %s202
      %p216 = scmp.eq.s32.totalorder %s29, 1
      %p217 = por %p215, %p216
      %p219 = scmp.ne.s32.totalorder %s202, %s218
      %p220 = scmp.eq.s32.totalorder %s29, 0
      %p221 = por %p219, %p220
      %s222 = ssub.s32 %s30, %s42
      %s223 = ssub.s32 %s31, %s38
      %s224 = sor.u32 %s222, %s223
      %p225 = scmp.eq.s32.totalorder %s224, 0
      %s227 = sadd.s32 %s226, 1
      %s228 = scalar_select %p225, %s226, %s227
      %p231 = pneg %p225
      %p232 = scmp.eq.s32.totalorder %s23, 1
      %p233 = por %p231, %p232
      %p234 = scmp.ne.s32.totalorder %s226, %s229
      %p235 = scmp.eq.s32.totalorder %s23, 0
      %p236 = por %p234, %p235
      %p237 = scmp.ne.s32.totalorder %s226, %s229
      %p238 = scmp.eq.s32.totalorder %s28, 1
      %p239 = por %p237, %p238
      %p240 = scmp.ne.s32.totalorder %s229, %s230
      %p241 = scmp.eq.s32.totalorder %s28, 0
      %p242 = por %p240, %p241
      %p243 = scmp.ne.s32.totalorder %s229, %s230
      %p244 = scmp.eq.s32.totalorder %s29, 1
      %p245 = por %p243, %p244
      %p247 = scmp.ne.s32.totalorder %s230, %s246
      %p248 = scmp.eq.s32.totalorder %s29, 0
      %p249 = por %p247, %p248
      %p250 = scmp.le.s32.totalorder 1, %s23
      %p251 = scmp.lt.s32.totalorder %s23, 3
      %p252 = pnand %p250, %p251
      %p253 = pneg %p252
      // Predicated region
      $region9: #{tpu_custom_call.1} parent=5 // pred_check
        _
      $region10: #{tpu_custom_call.1} parent=5 // pred_check_branch
        %255 = sbr.rel (%p252) target = $region12
      $region11: #{tpu_custom_call.1} parent=5 // pred_region
        %s256 = ssub.s32 %s23, 1
        // Predicated region
        $region13: #{tpu_custom_call.1} parent=11 // pred_check
          %p257 = pneg %p56
        $region14: #{tpu_custom_call.1} parent=11 // pred_check_branch
          %259 = sbr.rel (%p257) target = $region16
        $region15: #{tpu_custom_call.1} parent=11 // pred_region
          %s261 = ssub.s32 128, 128
          %262 = vsyncadd [#allocation5], %s261
          %265 = dma.hbm_to_smem %s0, 128, [#allocation2], [#allocation5]
        $region16: #{tpu_custom_call.1} parent=11 // pred_fallthru
          _
        // Predicated region
        $region17: #{tpu_custom_call.1} parent=11 // pred_check
          %p266 = pneg %p82
        $region18: #{tpu_custom_call.1} parent=11 // pred_check_branch
          %268 = sbr.rel (%p266) target = $region20
        $region19: #{tpu_custom_call.1} parent=11 // pred_region
          %s270 = ssub.s32 128, 128
          %271 = vsyncadd [#allocation3], %s270
          %s272 = smul.addr %s33, 128
          %s273 = scalar_lea.hbm %s1, %s272
          %s275 = sshll.u32 [#allocation6], 4
          %s276 = int_to_ptr.vmem [resolvable:$true] %s275
          %278 = dma.hbm_to_vmem [thread:$0]  %s273, 128, %s276, [#allocation3]
        $region20: #{tpu_custom_call.1} parent=11 // pred_fallthru
          _
        // Predicated region
        $region21: #{tpu_custom_call.1} parent=11 // pred_check
          %p279 = pneg %p108
        $region22: #{tpu_custom_call.1} parent=11 // pred_check_branch
          %281 = sbr.rel (%p279) target = $region24
        $region23: #{tpu_custom_call.1} parent=11 // pred_region
          %s283 = ssub.s32 128, 128
          %284 = vsyncadd [#allocation8], %s283
          %s285 = smul.addr %s33, 128
          %s286 = scalar_lea.hbm %s2, %s285
          %s288 = sshll.u32 [#allocation7], 4
          %s289 = int_to_ptr.vmem [resolvable:$true] %s288
          %291 = dma.hbm_to_vmem [thread:$0]  %s286, 128, %s289, [#allocation8]
        $region24: #{tpu_custom_call.1} parent=11 // pred_fallthru
          _
        // Predicated region
        $region25: #{tpu_custom_call.1} parent=11 // pred_check
          %p292 = pneg %p134
        $region26: #{tpu_custom_call.1} parent=11 // pred_check_branch
          %294 = sbr.rel (%p292) target = $region28
        $region27: #{tpu_custom_call.1} parent=11 // pred_region
          %p295 = scmp.lt.s32.totalorder %s33, 0
          %s296 = scalar_select %p295, %s33, 0
          %s297 = smul.addr %s296, 8
          %s298 = scalar_lea.vmem %s3, %s297
        $region28: #{tpu_custom_call.1} parent=11 // pred_fallthru
          _
        // Predicated region
        $region29: #{tpu_custom_call.1} parent=11 // pred_check
          %p299 = pneg %p160
        $region30: #{tpu_custom_call.1} parent=11 // pred_check_branch
          %301 = sbr.rel (%p299) target = $region32
        $region31: #{tpu_custom_call.1} parent=11 // pred_region
          %s303 = ssub.s32 128, 128
          %304 = vsyncadd [#allocation8], %s303
          %s305 = smul.addr %s33, 128
          %s306 = scalar_lea.hbm %s4, %s305
          %s308 = sshll.u32 [#allocation9], 4
          %s309 = int_to_ptr.vmem [resolvable:$true] %s308
          %311 = dma.hbm_to_vmem [thread:$0]  %s306, 128, %s309, [#allocation8]
        $region32: #{tpu_custom_call.1} parent=11 // pred_fallthru
          _
        // Predicated region
        $region33: #{tpu_custom_call.1} parent=11 // pred_check
          %p312 = pneg %p186
        $region34: #{tpu_custom_call.1} parent=11 // pred_check_branch
          %314 = sbr.rel (%p312) target = $region36
        $region35: #{tpu_custom_call.1} parent=11 // pred_region
          %p315 = scmp.lt.s32.totalorder %s33, 0
          %s316 = scalar_select %p315, %s33, 0
          %s317 = smul.addr %s316, 8
          %s318 = scalar_lea.vmem %s5, %s317
        $region36: #{tpu_custom_call.1} parent=11 // pred_fallthru
          _
      $region12: #{tpu_custom_call.1} parent=5 // pred_fallthru
        _
      %p319 = scmp.lt.s32.totalorder %s23, 2
      // Predicated region
      $region37: #{tpu_custom_call.1} parent=5 // pred_check
        %p320 = pneg %p319
      $region38: #{tpu_custom_call.1} parent=5 // pred_check_branch
        %322 = sbr.rel (%p320) target = $region40
      $region39: #{tpu_custom_call.1} parent=5 // pred_region
        _
      $region40: #{tpu_custom_call.1} parent=5 // pred_fallthru
        _
      %p323 = scmp.le.s32.totalorder 1, %s23
      %p324 = scmp.lt.s32.totalorder %s23, 3
      %p325 = pnand %p323, %p324
      %p326 = pneg %p325
      // Predicated region
      $region41: #{tpu_custom_call.1} parent=5 // pred_check
        _
      $region42: #{tpu_custom_call.1} parent=5 // pred_check_branch
        %328 = sbr.rel (%p325) target = $region44
      $region43: #{tpu_custom_call.1} parent=5 // pred_region
        %s329 = ssub.s32 %s23, 1
        // Predicated region
        $region45: #{tpu_custom_call.1} parent=43 // pred_check
          %p330 = pneg %p56
        $region46: #{tpu_custom_call.1} parent=43 // pred_check_branch
          %332 = sbr.rel (%p330) target = $region48
        $region47: #{tpu_custom_call.1} parent=43 // pred_region
          %333 = dma.done [#allocation5], 128
        $region48: #{tpu_custom_call.1} parent=43 // pred_fallthru
          _
        // Predicated region
        $region49: #{tpu_custom_call.1} parent=43 // pred_check
          %p334 = pneg %p82
        $region50: #{tpu_custom_call.1} parent=43 // pred_check_branch
          %336 = sbr.rel (%p334) target = $region52
        $region51: #{tpu_custom_call.1} parent=43 // pred_region
          %337 = dma.done [#allocation3], 128
        $region52: #{tpu_custom_call.1} parent=43 // pred_fallthru
          _
        // Predicated region
        $region53: #{tpu_custom_call.1} parent=43 // pred_check
          %p338 = pneg %p108
        $region54: #{tpu_custom_call.1} parent=43 // pred_check_branch
          %340 = sbr.rel (%p338) target = $region56
        $region55: #{tpu_custom_call.1} parent=43 // pred_region
          %341 = dma.done [#allocation8], 128
        $region56: #{tpu_custom_call.1} parent=43 // pred_fallthru
          _
        // Predicated region
        $region57: #{tpu_custom_call.1} parent=43 // pred_check
          %p342 = pneg %p160
        $region58: #{tpu_custom_call.1} parent=43 // pred_check_branch
          %344 = sbr.rel (%p342) target = $region60
        $region59: #{tpu_custom_call.1} parent=43 // pred_region
          %345 = dma.done [#allocation8], 128
        $region60: #{tpu_custom_call.1} parent=43 // pred_fallthru
          _
        %346 = sfence
        %p347 = pneg %p56
        %p348 = pneg %p53
        %p349 = pneg %p82
        %p350 = pneg %p79
        %p351 = pneg %p108
        %p352 = pneg %p105
        %p353 = scmp.lt.s32.totalorder %s33, 0
        %s354 = scalar_select %p353, %s33, 0
        %s355 = smul.addr %s354, 8
        %s356 = scalar_lea.vmem %s3, %s355
        %p357 = pneg %p134
        %p358 = pneg %p131
        %p359 = pneg %p160
        %p360 = pneg %p157
        %p361 = scmp.lt.s32.totalorder %s33, 0
        %s362 = scalar_select %p361, %s33, 0
        %s363 = smul.addr %s362, 8
        %s364 = scalar_lea.vmem %s5, %s363
        %p365 = pneg %p186
        %p366 = pneg %p183
        %p367 = pneg %p214
        %p368 = pneg %p211
        %s369 = sand.u32 %s201, 1
        %s370 = scalar_lea.sflag [#allocation4], %s369
        %s371 = sand.u32 %s201, 1
        %s372 = smul.addr %s371, 8
        %s373 = scalar_lea.vmem [#allocation10], %s372
        %p374 = pneg %p242
        %p375 = pneg %p239
        %s376 = sand.u32 %s229, 1
        %s377 = scalar_lea.sflag [#allocation12], %s376
        %s378 = sand.u32 %s229, 1
        %s379 = smul.addr %s378, 32
        %s380 = scalar_lea.vmem [#allocation11], %s379
        %p381 = scmp.lt.s32.totalorder %s33, 0
        %s382 = scalar_select %p381, %s33, 0
        %s383 = smul.addr %s382, 8
        %s384 = scalar_lea.vmem %s3, %s383
        %p385 = scmp.lt.s32.totalorder %s33, 0
        %s386 = scalar_select %p385, %s33, 0
        %s387 = smul.addr %s386, 8
        %s388 = scalar_lea.vmem %s5, %s387
        %v389 = vld [vmem:[#allocation6] sm:$0xff]
        %v390 = vld [vmem:[#allocation7] sm:$0xff]
        %v391 = vld [vmem:[%s384] sm:$0xff]
        %v392 = vld [vmem:[#allocation9] sm:$0xff]
        %v393 = vld [vmem:[%s388] sm:$0xff]
        %s394 = smul.u32 %s32, 8
        %s395 = sld [smem:[#allocation2 + %s394]]
        %s396 = sshra.s32 %s394, 7
        %s397 = sand.u32 %s394, 127
        %s398 = sadd.s32 %s396, 1
        %s399 = smul.u32 %s398, 128
        %s400 = sshra.s32 %s394, 7
        %s401 = sand.u32 %s394, 127
        %s402 = sadd.s32 %s399, %s401
        %s403 = sld [smem:[#allocation2 + %s402]]
        %s404 = sadd.s32 %s396, 2
        %s405 = smul.u32 %s404, 128
        %s406 = sadd.s32 %s405, %s401
        %s407 = sld [smem:[#allocation2 + %s406]]
        %s408 = sadd.s32 %s396, 3
        %s409 = smul.u32 %s408, 128
        %s410 = sadd.s32 %s409, %s401
        %s411 = sld [smem:[#allocation2 + %s410]]
        %s412 = sadd.s32 %s396, 4
        %s413 = smul.u32 %s412, 128
        %s414 = sadd.s32 %s413, %s401
        %s415 = sld [smem:[#allocation2 + %s414]]
        %s416 = sadd.s32 %s396, 5
        %s417 = smul.u32 %s416, 128
        %s418 = sadd.s32 %s417, %s401
        %s419 = sld [smem:[#allocation2 + %s418]]
        %v420 = vstv %s395
        %v421 = vsub.f32 %v389, %v420
        %v422 = vstv %s403
        %v423 = vsub.f32 %v390, %v422
        %v424 = vstv %s407
        %v425 = vsub.f32 %v424, %v389
        %v426 = vstv %s411
        %v427 = vsub.f32 %v426, %v390
        %s428 = sadd.f32 %s395, %s407
        %s429 = smul.f32 %s428, 0.5
        %s430 = sadd.f32 %s403, %s411
        %s431 = smul.f32 %s430, 0.5
        %v432 = vstv %s429
        %v433 = vsub.f32 %v432, %v391
        %v434 = vmax.f32 %v433, %v420
        %v435 = vstv %s431
        %v436 = vsub.f32 %v435, %v391
        %v437 = vmax.f32 %v436, %v422
        %v438 = vadd.f32 %v432, %v391
        %v439 = vmin.f32 %v438, %v424
        %v440 = vadd.f32 %v435, %v391
        %v441 = vmin.f32 %v440, %v426
        %v442 = vsub.f32 %v389, %v434
        %v443 = vsub.f32 %v390, %v437
        %v444 = vmin.f32 %v442, %v443
        %v445 = vsub.f32 %v439, %v389
        %v446 = vsub.f32 %v441, %v390
        %v447 = vmin.f32 %v445, %v446
        %v448 = vmin.f32 %v444, %v447
        %vm449 = vcmp.gt.f32.partialorder %v448, 0.0
        %v450 = vmax.f32 %v421, %v423
        %v451 = vmax.f32 %v425, %v427
        %v452 = vmax.f32 %v450, %v451
        %vm453 = vcmp.ge.f32.partialorder %v452, %v392
        %vm454 = vcmp.le.f32.partialorder %v452, %v393
        %vm455 = vmand %vm453, %vm454
        %vm456 = vmand %vm449, %vm455
        %v457 = vstv %s415
        %v458 = vsel %vm456, %v457, 1000000.0
        %vm459 = vcmp.lt.f32.partialorder %v458, 1000000.0
        %v460 = vsel %vm459, %v458, 1000000.0
        %v461 = vsel %vm459, %v421, 0.0
        %v462 = vsel %vm459, %v423, 0.0
        %v463 = vsel %vm459, %v425, 0.0
        %v464 = vsel %vm459, %v427, 0.0
        %v465 = vstv %s419
        %v466 = vsel %vm459, %v465, 0.0
        %s467 = sadd.s32 %s394, 1
        %s468 = sld [smem:[#allocation2 + %s467]]
        %s469 = sshra.s32 %s467, 7
        %s470 = sand.u32 %s467, 127
        %s471 = sadd.s32 %s469, 1
        %s472 = smul.u32 %s471, 128
        %s473 = sshra.s32 %s467, 7
        %s474 = sand.u32 %s467, 127
        %s475 = sadd.s32 %s472, %s474
        %s476 = sld [smem:[#allocation2 + %s475]]
        %s477 = sadd.s32 %s469, 2
        %s478 = smul.u32 %s477, 128
        %s479 = sadd.s32 %s478, %s474
        %s480 = sld [smem:[#allocation2 + %s479]]
        %s481 = sadd.s32 %s469, 3
        %s482 = smul.u32 %s481, 128
        %s483 = sadd.s32 %s482, %s474
        %s484 = sld [smem:[#allocation2 + %s483]]
        %s485 = sadd.s32 %s469, 4
        %s486 = smul.u32 %s485, 128
        %s487 = sadd.s32 %s486, %s474
        %s488 = sld [smem:[#allocation2 + %s487]]
        %s489 = sadd.s32 %s469, 5
        %s490 = smul.u32 %s489, 128
        %s491 = sadd.s32 %s490, %s474
        %s492 = sld [smem:[#allocation2 + %s491]]
        %v493 = vstv %s468
        %v494 = vsub.f32 %v389, %v493
        %v495 = vstv %s476
        %v496 = vsub.f32 %v390, %v495
        %v497 = vstv %s480
        %v498 = vsub.f32 %v497, %v389
        %v499 = vstv %s484
        %v500 = vsub.f32 %v499, %v390
        %s501 = sadd.f32 %s468, %s480
        %s502 = smul.f32 %s501, 0.5
        %s503 = sadd.f32 %s476, %s484
        %s504 = smul.f32 %s503, 0.5
        %v505 = vstv %s502
        %v506 = vsub.f32 %v505, %v391
        %v507 = vmax.f32 %v506, %v493
        %v508 = vstv %s504
        %v509 = vsub.f32 %v508, %v391
        %v510 = vmax.f32 %v509, %v495
        %v511 = vadd.f32 %v505, %v391
        %v512 = vmin.f32 %v511, %v497
        %v513 = vadd.f32 %v508, %v391
        %v514 = vmin.f32 %v513, %v499
        %v515 = vsub.f32 %v389, %v507
        %v516 = vsub.f32 %v390, %v510
        %v517 = vmin.f32 %v515, %v516
        %v518 = vsub.f32 %v512, %v389
        %v519 = vsub.f32 %v514, %v390
        %v520 = vmin.f32 %v518, %v519
        %v521 = vmin.f32 %v517, %v520
        %vm522 = vcmp.gt.f32.partialorder %v521, 0.0
        %v523 = vmax.f32 %v494, %v496
        %v524 = vmax.f32 %v498, %v500
        %v525 = vmax.f32 %v523, %v524
        %vm526 = vcmp.ge.f32.partialorder %v525, %v392
        %vm527 = vcmp.le.f32.partialorder %v525, %v393
        %vm528 = vmand %vm526, %vm527
        %vm529 = vmand %vm522, %vm528
        %v530 = vstv %s488
        %v531 = vsel %vm529, %v530, 1000000.0
        %vm532 = vcmp.lt.f32.partialorder %v531, %v460
        %v533 = vsel %vm532, %v531, %v460
        %v534 = vsel %vm532, %v494, %v461
        %v535 = vsel %vm532, %v496, %v462
        %v536 = vsel %vm532, %v498, %v463
        %v537 = vsel %vm532, %v500, %v464
        %v538 = vstv %s492
        %v539 = vsel %vm532, %v538, %v466
        %s540 = sadd.s32 %s394, 2
        %s541 = sld [smem:[#allocation2 + %s540]]
        %s542 = sshra.s32 %s540, 7
        %s543 = sand.u32 %s540, 127
        %s544 = sadd.s32 %s542, 1
        %s545 = smul.u32 %s544, 128
        %s546 = sshra.s32 %s540, 7
        %s547 = sand.u32 %s540, 127
        %s548 = sadd.s32 %s545, %s547
        %s549 = sld [smem:[#allocation2 + %s548]]
        %s550 = sadd.s32 %s542, 2
        %s551 = smul.u32 %s550, 128
        %s552 = sadd.s32 %s551, %s547
        %s553 = sld [smem:[#allocation2 + %s552]]
        %s554 = sadd.s32 %s542, 3
        %s555 = smul.u32 %s554, 128
        %s556 = sadd.s32 %s555, %s547
        %s557 = sld [smem:[#allocation2 + %s556]]
        %s558 = sadd.s32 %s542, 4
        %s559 = smul.u32 %s558, 128
        %s560 = sadd.s32 %s559, %s547
        %s561 = sld [smem:[#allocation2 + %s560]]
        %s562 = sadd.s32 %s542, 5
        %s563 = smul.u32 %s562, 128
        %s564 = sadd.s32 %s563, %s547
        %s565 = sld [smem:[#allocation2 + %s564]]
        %v566 = vstv %s541
        %v567 = vsub.f32 %v389, %v566
        %v568 = vstv %s549
        %v569 = vsub.f32 %v390, %v568
        %v570 = vstv %s553
        %v571 = vsub.f32 %v570, %v389
        %v572 = vstv %s557
        %v573 = vsub.f32 %v572, %v390
        %s574 = sadd.f32 %s541, %s553
        %s575 = smul.f32 %s574, 0.5
        %s576 = sadd.f32 %s549, %s557
        %s577 = smul.f32 %s576, 0.5
        %v578 = vstv %s575
        %v579 = vsub.f32 %v578, %v391
        %v580 = vmax.f32 %v579, %v566
        %v581 = vstv %s577
        %v582 = vsub.f32 %v581, %v391
        %v583 = vmax.f32 %v582, %v568
        %v584 = vadd.f32 %v578, %v391
        %v585 = vmin.f32 %v584, %v570
        %v586 = vadd.f32 %v581, %v391
        %v587 = vmin.f32 %v586, %v572
        %v588 = vsub.f32 %v389, %v580
        %v589 = vsub.f32 %v390, %v583
        %v590 = vmin.f32 %v588, %v589
        %v591 = vsub.f32 %v585, %v389
        %v592 = vsub.f32 %v587, %v390
        %v593 = vmin.f32 %v591, %v592
        %v594 = vmin.f32 %v590, %v593
        %vm595 = vcmp.gt.f32.partialorder %v594, 0.0
        %v596 = vmax.f32 %v567, %v569
        %v597 = vmax.f32 %v571, %v573
        %v598 = vmax.f32 %v596, %v597
        %vm599 = vcmp.ge.f32.partialorder %v598, %v392
        %vm600 = vcmp.le.f32.partialorder %v598, %v393
        %vm601 = vmand %vm599, %vm600
        %vm602 = vmand %vm595, %vm601
        %v603 = vstv %s561
        %v604 = vsel %vm602, %v603, 1000000.0
        %vm605 = vcmp.lt.f32.partialorder %v604, %v533
        %v606 = vsel %vm605, %v604, %v533
        %v607 = vsel %vm605, %v567, %v534
        %v608 = vsel %vm605, %v569, %v535
        %v609 = vsel %vm605, %v571, %v536
        %v610 = vsel %vm605, %v573, %v537
        %v611 = vstv %s565
        %v612 = vsel %vm605, %v611, %v539
        %s613 = sadd.s32 %s394, 3
        %s614 = sld [smem:[#allocation2 + %s613]]
        %s615 = sshra.s32 %s613, 7
        %s616 = sand.u32 %s613, 127
        %s617 = sadd.s32 %s615, 1
        %s618 = smul.u32 %s617, 128
        %s619 = sshra.s32 %s613, 7
        %s620 = sand.u32 %s613, 127
        %s621 = sadd.s32 %s618, %s620
        %s622 = sld [smem:[#allocation2 + %s621]]
        %s623 = sadd.s32 %s615, 2
        %s624 = smul.u32 %s623, 128
        %s625 = sadd.s32 %s624, %s620
        %s626 = sld [smem:[#allocation2 + %s625]]
        %s627 = sadd.s32 %s615, 3
        %s628 = smul.u32 %s627, 128
        %s629 = sadd.s32 %s628, %s620
        %s630 = sld [smem:[#allocation2 + %s629]]
        %s631 = sadd.s32 %s615, 4
        %s632 = smul.u32 %s631, 128
        %s633 = sadd.s32 %s632, %s620
        %s634 = sld [smem:[#allocation2 + %s633]]
        %s635 = sadd.s32 %s615, 5
        %s636 = smul.u32 %s635, 128
        %s637 = sadd.s32 %s636, %s620
        %s638 = sld [smem:[#allocation2 + %s637]]
        %v639 = vstv %s614
        %v640 = vsub.f32 %v389, %v639
        %v641 = vstv %s622
        %v642 = vsub.f32 %v390, %v641
        %v643 = vstv %s626
        %v644 = vsub.f32 %v643, %v389
        %v645 = vstv %s630
        %v646 = vsub.f32 %v645, %v390
        %s647 = sadd.f32 %s614, %s626
        %s648 = smul.f32 %s647, 0.5
        %s649 = sadd.f32 %s622, %s630
        %s650 = smul.f32 %s649, 0.5
        %v651 = vstv %s648
        %v652 = vsub.f32 %v651, %v391
        %v653 = vmax.f32 %v652, %v639
        %v654 = vstv %s650
        %v655 = vsub.f32 %v654, %v391
        %v656 = vmax.f32 %v655, %v641
        %v657 = vadd.f32 %v651, %v391
        %v658 = vmin.f32 %v657, %v643
        %v659 = vadd.f32 %v654, %v391
        %v660 = vmin.f32 %v659, %v645
        %v661 = vsub.f32 %v389, %v653
        %v662 = vsub.f32 %v390, %v656
        %v663 = vmin.f32 %v661, %v662
        %v664 = vsub.f32 %v658, %v389
        %v665 = vsub.f32 %v660, %v390
        %v666 = vmin.f32 %v664, %v665
        %v667 = vmin.f32 %v663, %v666
        %vm668 = vcmp.gt.f32.partialorder %v667, 0.0
        %v669 = vmax.f32 %v640, %v642
        %v670 = vmax.f32 %v644, %v646
        %v671 = vmax.f32 %v669, %v670
        %vm672 = vcmp.ge.f32.partialorder %v671, %v392
        %vm673 = vcmp.le.f32.partialorder %v671, %v393
        %vm674 = vmand %vm672, %vm673
        %vm675 = vmand %vm668, %vm674
        %v676 = vstv %s634
        %v677 = vsel %vm675, %v676, 1000000.0
        %vm678 = vcmp.lt.f32.partialorder %v677, %v606
        %v679 = vsel %vm678, %v677, %v606
        %v680 = vsel %vm678, %v640, %v607
        %v681 = vsel %vm678, %v642, %v608
        %v682 = vsel %vm678, %v644, %v609
        %v683 = vsel %vm678, %v646, %v610
        %v684 = vstv %s638
        %v685 = vsel %vm678, %v684, %v612
        %s686 = sadd.s32 %s394, 4
        %s687 = sld [smem:[#allocation2 + %s686]]
        %s688 = sshra.s32 %s686, 7
        %s689 = sand.u32 %s686, 127
        %s690 = sadd.s32 %s688, 1
        %s691 = smul.u32 %s690, 128
        %s692 = sshra.s32 %s686, 7
        %s693 = sand.u32 %s686, 127
        %s694 = sadd.s32 %s691, %s693
        %s695 = sld [smem:[#allocation2 + %s694]]
        %s696 = sadd.s32 %s688, 2
        %s697 = smul.u32 %s696, 128
        %s698 = sadd.s32 %s697, %s693
        %s699 = sld [smem:[#allocation2 + %s698]]
        %s700 = sadd.s32 %s688, 3
        %s701 = smul.u32 %s700, 128
        %s702 = sadd.s32 %s701, %s693
        %s703 = sld [smem:[#allocation2 + %s702]]
        %s704 = sadd.s32 %s688, 4
        %s705 = smul.u32 %s704, 128
        %s706 = sadd.s32 %s705, %s693
        %s707 = sld [smem:[#allocation2 + %s706]]
        %s708 = sadd.s32 %s688, 5
        %s709 = smul.u32 %s708, 128
        %s710 = sadd.s32 %s709, %s693
        %s711 = sld [smem:[#allocation2 + %s710]]
        %v712 = vstv %s687
        %v713 = vsub.f32 %v389, %v712
        %v714 = vstv %s695
        %v715 = vsub.f32 %v390, %v714
        %v716 = vstv %s699
        %v717 = vsub.f32 %v716, %v389
        %v718 = vstv %s703
        %v719 = vsub.f32 %v718, %v390
        %s720 = sadd.f32 %s687, %s699
        %s721 = smul.f32 %s720, 0.5
        %s722 = sadd.f32 %s695, %s703
        %s723 = smul.f32 %s722, 0.5
        %v724 = vstv %s721
        %v725 = vsub.f32 %v724, %v391
        %v726 = vmax.f32 %v725, %v712
        %v727 = vstv %s723
        %v728 = vsub.f32 %v727, %v391
        %v729 = vmax.f32 %v728, %v714
        %v730 = vadd.f32 %v724, %v391
        %v731 = vmin.f32 %v730, %v716
        %v732 = vadd.f32 %v727, %v391
        %v733 = vmin.f32 %v732, %v718
        %v734 = vsub.f32 %v389, %v726
        %v735 = vsub.f32 %v390, %v729
        %v736 = vmin.f32 %v734, %v735
        %v737 = vsub.f32 %v731, %v389
        %v738 = vsub.f32 %v733, %v390
        %v739 = vmin.f32 %v737, %v738
        %v740 = vmin.f32 %v736, %v739
        %vm741 = vcmp.gt.f32.partialorder %v740, 0.0
        %v742 = vmax.f32 %v713, %v715
        %v743 = vmax.f32 %v717, %v719
        %v744 = vmax.f32 %v742, %v743
        %vm745 = vcmp.ge.f32.partialorder %v744, %v392
        %vm746 = vcmp.le.f32.partialorder %v744, %v393
        %vm747 = vmand %vm745, %vm746
        %vm748 = vmand %vm741, %vm747
        %v749 = vstv %s707
        %v750 = vsel %vm748, %v749, 1000000.0
        %vm751 = vcmp.lt.f32.partialorder %v750, %v679
        %v752 = vsel %vm751, %v750, %v679
        %v753 = vsel %vm751, %v713, %v680
        %v754 = vsel %vm751, %v715, %v681
        %v755 = vsel %vm751, %v717, %v682
        %v756 = vsel %vm751, %v719, %v683
        %v757 = vstv %s711
        %v758 = vsel %vm751, %v757, %v685
        %s759 = sadd.s32 %s394, 5
        %s760 = sld [smem:[#allocation2 + %s759]]
        %s761 = sshra.s32 %s759, 7
        %s762 = sand.u32 %s759, 127
        %s763 = sadd.s32 %s761, 1
        %s764 = smul.u32 %s763, 128
        %s765 = sshra.s32 %s759, 7
        %s766 = sand.u32 %s759, 127
        %s767 = sadd.s32 %s764, %s766
        %s768 = sld [smem:[#allocation2 + %s767]]
        %s769 = sadd.s32 %s761, 2
        %s770 = smul.u32 %s769, 128
        %s771 = sadd.s32 %s770, %s766
        %s772 = sld [smem:[#allocation2 + %s771]]
        %s773 = sadd.s32 %s761, 3
        %s774 = smul.u32 %s773, 128
        %s775 = sadd.s32 %s774, %s766
        %s776 = sld [smem:[#allocation2 + %s775]]
        %s777 = sadd.s32 %s761, 4
        %s778 = smul.u32 %s777, 128
        %s779 = sadd.s32 %s778, %s766
        %s780 = sld [smem:[#allocation2 + %s779]]
        %s781 = sadd.s32 %s761, 5
        %s782 = smul.u32 %s781, 128
        %s783 = sadd.s32 %s782, %s766
        %s784 = sld [smem:[#allocation2 + %s783]]
        %v785 = vstv %s760
        %v786 = vsub.f32 %v389, %v785
        %v787 = vstv %s768
        %v788 = vsub.f32 %v390, %v787
        %v789 = vstv %s772
        %v790 = vsub.f32 %v789, %v389
        %v791 = vstv %s776
        %v792 = vsub.f32 %v791, %v390
        %s793 = sadd.f32 %s760, %s772
        %s794 = smul.f32 %s793, 0.5
        %s795 = sadd.f32 %s768, %s776
        %s796 = smul.f32 %s795, 0.5
        %v797 = vstv %s794
        %v798 = vsub.f32 %v797, %v391
        %v799 = vmax.f32 %v798, %v785
        %v800 = vstv %s796
        %v801 = vsub.f32 %v800, %v391
        %v802 = vmax.f32 %v801, %v787
        %v803 = vadd.f32 %v797, %v391
        %v804 = vmin.f32 %v803, %v789
        %v805 = vadd.f32 %v800, %v391
        %v806 = vmin.f32 %v805, %v791
        %v807 = vsub.f32 %v389, %v799
        %v808 = vsub.f32 %v390, %v802
        %v809 = vmin.f32 %v807, %v808
        %v810 = vsub.f32 %v804, %v389
        %v811 = vsub.f32 %v806, %v390
        %v812 = vmin.f32 %v810, %v811
        %v813 = vmin.f32 %v809, %v812
        %vm814 = vcmp.gt.f32.partialorder %v813, 0.0
        %v815 = vmax.f32 %v786, %v788
        %v816 = vmax.f32 %v790, %v792
        %v817 = vmax.f32 %v815, %v816
        %vm818 = vcmp.ge.f32.partialorder %v817, %v392
        %vm819 = vcmp.le.f32.partialorder %v817, %v393
        %vm820 = vmand %vm818, %vm819
        %vm821 = vmand %vm814, %vm820
        %v822 = vstv %s780
        %v823 = vsel %vm821, %v822, 1000000.0
        %vm824 = vcmp.lt.f32.partialorder %v823, %v752
        %v825 = vsel %vm824, %v823, %v752
        %v826 = vsel %vm824, %v786, %v753
        %v827 = vsel %vm824, %v788, %v754
        %v828 = vsel %vm824, %v790, %v755
        %v829 = vsel %vm824, %v792, %v756
        %v830 = vstv %s784
        %v831 = vsel %vm824, %v830, %v758
        %s832 = sadd.s32 %s394, 6
        %s833 = sld [smem:[#allocation2 + %s832]]
        %s834 = sshra.s32 %s832, 7
        %s835 = sand.u32 %s832, 127
        %s836 = sadd.s32 %s834, 1
        %s837 = smul.u32 %s836, 128
        %s838 = sshra.s32 %s832, 7
        %s839 = sand.u32 %s832, 127
        %s840 = sadd.s32 %s837, %s839
        %s841 = sld [smem:[#allocation2 + %s840]]
        %s842 = sadd.s32 %s834, 2
        %s843 = smul.u32 %s842, 128
        %s844 = sadd.s32 %s843, %s839
        %s845 = sld [smem:[#allocation2 + %s844]]
        %s846 = sadd.s32 %s834, 3
        %s847 = smul.u32 %s846, 128
        %s848 = sadd.s32 %s847, %s839
        %s849 = sld [smem:[#allocation2 + %s848]]
        %s850 = sadd.s32 %s834, 4
        %s851 = smul.u32 %s850, 128
        %s852 = sadd.s32 %s851, %s839
        %s853 = sld [smem:[#allocation2 + %s852]]
        %s854 = sadd.s32 %s834, 5
        %s855 = smul.u32 %s854, 128
        %s856 = sadd.s32 %s855, %s839
        %s857 = sld [smem:[#allocation2 + %s856]]
        %v858 = vstv %s833
        %v859 = vsub.f32 %v389, %v858
        %v860 = vstv %s841
        %v861 = vsub.f32 %v390, %v860
        %v862 = vstv %s845
        %v863 = vsub.f32 %v862, %v389
        %v864 = vstv %s849
        %v865 = vsub.f32 %v864, %v390
        %s866 = sadd.f32 %s833, %s845
        %s867 = smul.f32 %s866, 0.5
        %s868 = sadd.f32 %s841, %s849
        %s869 = smul.f32 %s868, 0.5
        %v870 = vstv %s867
        %v871 = vsub.f32 %v870, %v391
        %v872 = vmax.f32 %v871, %v858
        %v873 = vstv %s869
        %v874 = vsub.f32 %v873, %v391
        %v875 = vmax.f32 %v874, %v860
        %v876 = vadd.f32 %v870, %v391
        %v877 = vmin.f32 %v876, %v862
        %v878 = vadd.f32 %v873, %v391
        %v879 = vmin.f32 %v878, %v864
        %v880 = vsub.f32 %v389, %v872
        %v881 = vsub.f32 %v390, %v875
        %v882 = vmin.f32 %v880, %v881
        %v883 = vsub.f32 %v877, %v389
        %v884 = vsub.f32 %v879, %v390
        %v885 = vmin.f32 %v883, %v884
        %v886 = vmin.f32 %v882, %v885
        %vm887 = vcmp.gt.f32.partialorder %v886, 0.0
        %v888 = vmax.f32 %v859, %v861
        %v889 = vmax.f32 %v863, %v865
        %v890 = vmax.f32 %v888, %v889
        %vm891 = vcmp.ge.f32.partialorder %v890, %v392
        %vm892 = vcmp.le.f32.partialorder %v890, %v393
        %vm893 = vmand %vm891, %vm892
        %vm894 = vmand %vm887, %vm893
        %v895 = vstv %s853
        %v896 = vsel %vm894, %v895, 1000000.0
        %vm897 = vcmp.lt.f32.partialorder %v896, %v825
        %v898 = vsel %vm897, %v896, %v825
        %v899 = vsel %vm897, %v859, %v826
        %v900 = vsel %vm897, %v861, %v827
        %v901 = vsel %vm897, %v863, %v828
        %v902 = vsel %vm897, %v865, %v829
        %v903 = vstv %s857
        %v904 = vsel %vm897, %v903, %v831
        %s905 = sadd.s32 %s394, 7
        %s906 = sld [smem:[#allocation2 + %s905]]
        %s907 = sshra.s32 %s905, 7
        %s908 = sand.u32 %s905, 127
        %s909 = sadd.s32 %s907, 1
        %s910 = smul.u32 %s909, 128
        %s911 = sshra.s32 %s905, 7
        %s912 = sand.u32 %s905, 127
        %s913 = sadd.s32 %s910, %s912
        %s914 = sld [smem:[#allocation2 + %s913]]
        %s915 = sadd.s32 %s907, 2
        %s916 = smul.u32 %s915, 128
        %s917 = sadd.s32 %s916, %s912
        %s918 = sld [smem:[#allocation2 + %s917]]
        %s919 = sadd.s32 %s907, 3
        %s920 = smul.u32 %s919, 128
        %s921 = sadd.s32 %s920, %s912
        %s922 = sld [smem:[#allocation2 + %s921]]
        %s923 = sadd.s32 %s907, 4
        %s924 = smul.u32 %s923, 128
        %s925 = sadd.s32 %s924, %s912
        %s926 = sld [smem:[#allocation2 + %s925]]
        %s927 = sadd.s32 %s907, 5
        %s928 = smul.u32 %s927, 128
        %s929 = sadd.s32 %s928, %s912
        %s930 = sld [smem:[#allocation2 + %s929]]
        %v931 = vstv %s906
        %v932 = vsub.f32 %v389, %v931
        %v933 = vstv %s914
        %v934 = vsub.f32 %v390, %v933
        %v935 = vstv %s918
        %v936 = vsub.f32 %v935, %v389
        %v937 = vstv %s922
        %v938 = vsub.f32 %v937, %v390
        %s939 = sadd.f32 %s906, %s918
        %s940 = smul.f32 %s939, 0.5
        %s941 = sadd.f32 %s914, %s922
        %s942 = smul.f32 %s941, 0.5
        %v943 = vstv %s940
        %v944 = vsub.f32 %v943, %v391
        %v945 = vmax.f32 %v944, %v931
        %v946 = vstv %s942
        %v947 = vsub.f32 %v946, %v391
        %v948 = vmax.f32 %v947, %v933
        %v949 = vadd.f32 %v943, %v391
        %v950 = vmin.f32 %v949, %v935
        %v951 = vadd.f32 %v946, %v391
        %v952 = vmin.f32 %v951, %v937
        %v953 = vsub.f32 %v389, %v945
        %v954 = vsub.f32 %v390, %v948
        %v955 = vmin.f32 %v953, %v954
        %v956 = vsub.f32 %v950, %v389
        %v957 = vsub.f32 %v952, %v390
        %v958 = vmin.f32 %v956, %v957
        %v959 = vmin.f32 %v955, %v958
        %vm960 = vcmp.gt.f32.partialorder %v959, 0.0
        %v961 = vmax.f32 %v932, %v934
        %v962 = vmax.f32 %v936, %v938
        %v963 = vmax.f32 %v961, %v962
        %vm964 = vcmp.ge.f32.partialorder %v963, %v392
        %vm965 = vcmp.le.f32.partialorder %v963, %v393
        %vm966 = vmand %vm964, %vm965
        %vm967 = vmand %vm960, %vm966
        %v968 = vstv %s926
        %v969 = vsel %vm967, %v968, 1000000.0
        %vm970 = vcmp.lt.f32.partialorder %v969, %v898
        %v971 = vsel %vm970, %v969, %v898
        %v972 = vsel %vm970, %v932, %v899
        %v973 = vsel %vm970, %v934, %v900
        %v974 = vsel %vm970, %v936, %v901
        %v975 = vsel %vm970, %v938, %v902
        %v976 = vstv %s930
        %v977 = vsel %vm970, %v976, %v904
        %vm978 = vcmp.ge.f32.partialorder %v971, 1000000.0
        %v979 = vsel %vm978, 0.0, %v977
        %v980 = vcvt.f32.s32.to.zero.pseudo %v979
        %981 = vst [vmem:[%s373] sm:$0xff] %v980
        %982 = vst [vmem:[%s380] sm:$0xff] %v972
        %s983 = scalar_lea.vmem %s380, 8 [#allocation11]
        %984 = vst [vmem:[%s983] sm:$0xff] %v973
        %s985 = scalar_lea.vmem %s380, 16 [#allocation11]
        %986 = vst [vmem:[%s985] sm:$0xff] %v974
        %s987 = scalar_lea.vmem %s380, 24 [#allocation11]
        %988 = vst [vmem:[%s987] sm:$0xff] %v975
        %s989 = sand.u32 %s201, 1
        %s990 = scalar_lea.sflag [#allocation4], %s989
        %s991 = sand.u32 %s201, 1
        %s992 = smul.addr %s991, 8
        %s993 = scalar_lea.vmem [#allocation10], %s992
        %s994 = sand.u32 %s229, 1
        %s995 = scalar_lea.sflag [#allocation12], %s994
        %s996 = sand.u32 %s229, 1
        %s997 = smul.addr %s996, 32
        %s998 = scalar_lea.vmem [#allocation11], %s997
        // Predicated region
        $region61: #{tpu_custom_call.1} parent=43 // pred_check
          %p999 = pneg %p211
        $region62: #{tpu_custom_call.1} parent=43 // pred_check_branch
          %1001 = sbr.rel (%p999) target = $region64
        $region63: #{tpu_custom_call.1} parent=43 // pred_region
          %s1003 = ssub.s32 128, 128
          %1004 = vsyncadd %s990, %s1003
          %s1005 = sadd.s32 %s33, %s32
          %s1006 = smul.addr %s1005, 128
          %s1007 = scalar_lea.hbm %s6, %s1006
          %s1009 = sshll.u32 %s993, 4
          %s1010 = int_to_ptr.vmem [resolvable:$true] %s1009
          %1012 = dma.vmem_to_hbm [thread:$0]  %s1010, 128, %s1007, %s990
        $region64: #{tpu_custom_call.1} parent=43 // pred_fallthru
          _
        // Predicated region
        $region65: #{tpu_custom_call.1} parent=43 // pred_check
          %p1013 = pneg %p239
        $region66: #{tpu_custom_call.1} parent=43 // pred_check_branch
          %1015 = sbr.rel (%p1013) target = $region68
        $region67: #{tpu_custom_call.1} parent=43 // pred_region
          %s1017 = ssub.s32 512, 512
          %1018 = vsyncadd %s995, %s1017
          %s1019 = sadd.s32 %s33, %s32
          %s1020 = smul.addr %s1019, 128
          %s1021 = scalar_lea.hbm %s7, %s1020
          %s1022 = sshll.u32 %s998, 4
          %s1023 = int_to_ptr.vmem [resolvable:$true] %s1022
          %1028 = dma.vmem_to_hbm [thread:$0]  %s1023, 512, %s1021, %s995, 128, 256, 8
        $region68: #{tpu_custom_call.1} parent=43 // pred_fallthru
          _
      $region44: #{tpu_custom_call.1} parent=5 // pred_fallthru
        _
      %p1029 = scmp.le.s32.totalorder 2, %s23
      // Predicated region
      $region69: #{tpu_custom_call.1} parent=5 // pred_check
        %p1030 = pneg %p1029
      $region70: #{tpu_custom_call.1} parent=5 // pred_check_branch
        %1032 = sbr.rel (%p1030) target = $region72
      $region71: #{tpu_custom_call.1} parent=5 // pred_region
        %s1033 = ssub.s32 %s23, 2
        // Predicated region
        $region73: #{tpu_custom_call.1} parent=71 // pred_check
          %p1034 = pneg %p217
        $region74: #{tpu_custom_call.1} parent=71 // pred_check_branch
          %1036 = sbr.rel (%p1034) target = $region76
        $region75: #{tpu_custom_call.1} parent=71 // pred_region
          %s1037 = sand.u32 %s202, 1
          %s1038 = scalar_lea.sflag [#allocation4], %s1037
          %s1039 = sand.u32 %s202, 1
          %s1040 = smul.addr %s1039, 8
          %s1041 = scalar_lea.vmem [#allocation10], %s1040
          %1042 = dma.done %s1038, 128
        $region76: #{tpu_custom_call.1} parent=71 // pred_fallthru
          _
        // Predicated region
        $region77: #{tpu_custom_call.1} parent=71 // pred_check
          %p1043 = pneg %p245
        $region78: #{tpu_custom_call.1} parent=71 // pred_check_branch
          %1045 = sbr.rel (%p1043) target = $region80
        $region79: #{tpu_custom_call.1} parent=71 // pred_region
          %s1046 = sand.u32 %s230, 1
          %s1047 = scalar_lea.sflag [#allocation12], %s1046
          %s1048 = sand.u32 %s230, 1
          %s1049 = smul.addr %s1048, 32
          %s1050 = scalar_lea.vmem [#allocation11], %s1049
          %1051 = dma.done %s1047, 512
        $region80: #{tpu_custom_call.1} parent=71 // pred_fallthru
          _
      $region72: #{tpu_custom_call.1} parent=5 // pred_fallthru
        _
    $region6: #{tpu_custom_call.1} parent=1 // loop_footer
      %s27 = sadd.s32 1, %s23
    $region7: #{tpu_custom_call.1} parent=1 // loop_footer_branch
      %22 = sbr.rel target = $region3
    $region8: #{tpu_custom_call.1} parent=1 // loop_exit
      _
    %1052 = vsyncpa [#allocation3], 1
    %s1053 = scalar_lea.sflag [#allocation3], 1
    %1054 = vsyncpa %s1053, 1
    %1055 = vsyncpa [#allocation8], 1
    %1056 = vsyncpa [#allocation4], 1
    %s1057 = scalar_lea.sflag [#allocation4], 1
    %1058 = vsyncpa %s1057, 1
    %1059 = vsyncpa [#allocation12], 1
    %s1060 = scalar_lea.sflag [#allocation12], 1
    %1061 = vsyncpa %s1060, 1
    %1062 = vsyncpa [#allocation5], 1
    %s1063 = scalar_lea.sflag [#allocation5], 1
    %1064 = vsyncpa %s1063, 1

</llo_original>
